<compile_context>
chip_gen: v7x
topology: tpu7x:2x2x1
jax: 0.10.0
libtpu: 0.0.40
codegen_flags: <defaults>
</compile_context>

<pallas_src>
import functools

import jax
import jax.numpy as jnp
from jax.experimental import pallas as pl
from jax.experimental.pallas import tpu as pltpu


LANE = 128      # lane-dim padding (features, nodes)
ROW_TILE = 64   # adjacency row block (multiple of 16 for bf16 sublane packing)


def _round_up(v, m):
    return (v + m - 1) // m * m


# ----------------------------------------------------------------------------
# Fused two-layer LEConv kernel.
# grid = (phase, row_tile):
#   phase 0: conv1 (+ReLU) -> h kept in VMEM scratch
#   phase 1: conv2 from h  -> output
# ----------------------------------------------------------------------------
def _fused_leconv2_kernel(x_ref, adj_ref, deg_ref,
                          w1_ref, b1_ref, w2_ref, b2_ref,
                          out_ref,
                          a_scr, b_scr, c_scr, h_scr,
                          *, hp, tm):
    phase = pl.program_id(0)
    tile = pl.program_id(1)

    # ---- per-phase projection of ALL nodes (runs once, at the first row tile)
    # one wide (F, 3H) bf16 MXU matmul instead of three narrow ones.
    @pl.when((phase == 0) & (tile == 0))
    def _():
        proj = jnp.dot(x_ref[...], w1_ref[...],
                       preferred_element_type=jnp.float32) + b1_ref[...]
        a_scr[...] = proj[:, 0 * hp:1 * hp].astype(a_scr.dtype)
        b_scr[...] = proj[:, 1 * hp:2 * hp]
        c_scr[...] = proj[:, 2 * hp:3 * hp]

    @pl.when((phase == 1) & (tile == 0))
    def _():
        proj = jnp.dot(h_scr[...], w2_ref[...],
                       preferred_element_type=jnp.float32) + b2_ref[...]
        a_scr[...] = proj[:, 0 * hp:1 * hp].astype(a_scr.dtype)
        b_scr[...] = proj[:, 1 * hp:2 * hp]
        c_scr[...] = proj[:, 2 * hp:3 * hp]

    # ---- per-row-tile aggregation: agg = A[rows, :] @ a  (bf16 MXU, f32 acc)
    agg = jnp.dot(adj_ref[...], a_scr[...], preferred_element_type=jnp.float32)

    start = pl.multiple_of(tile * tm, tm)
    rows = pl.ds(start, tm)
    val = agg - deg_ref[...] * b_scr[rows, :] + c_scr[rows, :]   # (tm, hp) f32

    @pl.when(phase == 0)
    def _():
        h_scr[rows, :] = jnp.maximum(val, 0.0).astype(h_scr.dtype)
        out_ref[...] = jnp.zeros_like(out_ref)   # placeholder; overwritten in phase 1

    @pl.when(phase == 1)
    def _():
        out_ref[...] = val.astype(out_ref.dtype)


# ----------------------------------------------------------------------------
# Wrapper: padding, weight packing, dense adjacency, pallas_call.
# ----------------------------------------------------------------------------
def _pack_leconv_params(p, in_dim, in_pad, h, hp):
    """W1|W2|W3 -> (in_pad, 3*hp) bf16; b1|0|b3 -> (1, 3*hp) f32."""
    w = jnp.zeros((in_pad, 3 * hp), jnp.float32)
    w = w.at[:in_dim, 0:h].set(p["w1"])
    w = w.at[:in_dim, hp:hp + h].set(p["w2"])
    w = w.at[:in_dim, 2 * hp:2 * hp + h].set(p["w3"])
    b = jnp.zeros((1, 3 * hp), jnp.float32)
    b = b.at[0, 0:h].set(p["b1"])
    b = b.at[0, 2 * hp:2 * hp + h].set(p["b3"])
    return w.astype(jnp.bfloat16), b


def causal_att_net_forward(params, x, edge_index, edge_attr):
    """CausalAttNet.forward: conv2(relu(conv1(x))) -> (N, hidden) node features."""
    n, f = x.shape
    hid = params["conv1"]["w1"].shape[1]

    np_ = _round_up(n, LANE)
    fp = _round_up(f, LANE)
    hp = _round_up(hid, LANE)
    tm = ROW_TILE
    nt = np_ // tm

    # Dense weighted adjacency A[dst, src] (+ shared degree), zero-padded.
    src, dst = edge_index[0], edge_index[1]
    ew = edge_attr.reshape(-1).astype(jnp.float32)
    adj = jnp.zeros((np_, np_), jnp.float32).at[dst, src].add(ew)
    deg = jnp.sum(adj, axis=1, keepdims=True)        # (np_, 1) f32, shared by both layers
    adj_bf16 = adj.astype(jnp.bfloat16)

    x_p = jnp.zeros((np_, fp), jnp.bfloat16).at[:n, :f].set(x.astype(jnp.bfloat16))

    w1c, b1c = _pack_leconv_params(params["conv1"], f, fp, hid, hp)
    w2c, b2c = _pack_leconv_params(params["conv2"], hid, hp, hid, hp)

    kernel = functools.partial(_fused_leconv2_kernel, hp=hp, tm=tm)

    out_p = pl.pallas_call(
        kernel,
        out_shape=jax.ShapeDtypeStruct((np_, hp), jnp.float32),
        grid_spec=pltpu.PrefetchScalarGridSpec(
            num_scalar_prefetch=0,
            grid=(2, nt),                                          # (phase, row tile)
            in_specs=[
                pl.BlockSpec((np_, fp), lambda p, i: (0, 0)),      # x (VMEM-resident)
                pl.BlockSpec((tm, np_), lambda p, i: (i, 0)),      # adj row block (streamed)
                pl.BlockSpec((tm, 1), lambda p, i: (i, 0)),        # degree row block
                pl.BlockSpec((fp, 3 * hp), lambda p, i: (0, 0)),   # W1|W2|W3 layer 1
                pl.BlockSpec((1, 3 * hp), lambda p, i: (0, 0)),    # b1|0|b3 layer 1
                pl.BlockSpec((hp, 3 * hp), lambda p, i: (0, 0)),   # W1|W2|W3 layer 2
                pl.BlockSpec((1, 3 * hp), lambda p, i: (0, 0)),    # b1|0|b3 layer 2
            ],
            out_specs=pl.BlockSpec((tm, hp), lambda p, i: (i, 0)),
            scratch_shapes=[
                pltpu.VMEM((np_, hp), jnp.bfloat16),   # a (aggregation src, current layer)
                pltpu.VMEM((np_, hp), jnp.float32),    # b
                pltpu.VMEM((np_, hp), jnp.float32),    # c
                pltpu.VMEM((np_, hp), jnp.bfloat16),   # h (layer-1 output)
            ]),
        compiler_params=pltpu.CompilerParams(
            # Phase axis is sequential, and phase-1 row tiles depend on ALL
            # phase-0 row tiles through the h scratch -> both "arbitrary".
            dimension_semantics=("arbitrary", "arbitrary"),
            vmem_limit_bytes=32 * 1024 * 1024),
    )(x_p, adj_bf16, deg, w1c, b1c, w2c, b2c)

    return out_p[:n, :hid]


# ----------------------------------------------------------------------------
# Parameter init (torch.nn.Linear-style uniform) and pure-JAX reference.
# ----------------------------------------------------------------------------
def init_linear(key, fan_in, fan_out, with_bias=True):
    kw, kb = jax.random.split(key)
    bound = 1.0 / jnp.sqrt(jnp.float32(fan_in))
    w = jax.random.uniform(kw, (fan_in, fan_out), jnp.float32, -bound, bound)
    b = (jax.random.uniform(kb, (fan_out,), jnp.float32, -bound, bound)
         if with_bias else jnp.zeros((fan_out,), jnp.float32))
    return w, b


def init_leconv(key, in_dim, out_dim):
    k1, k2, k3 = jax.random.split(key, 3)
    w1, b1 = init_linear(k1, in_dim, out_dim, with_bias=True)
    w2, _ = init_linear(k2, in_dim, out_dim, with_bias=False)
    w3, b3 = init_linear(k3, in_dim, out_dim, with_bias=True)
    return dict(w1=w1, b1=b1, w2=w2, w3=w3, b3=b3)


def leconv_ref(x, edge_index, edge_weight, p, apply_relu):
    a = x @ p["w1"] + p["b1"]
    b = x @ p["w2"]
    c = x @ p["w3"] + p["b3"]
    src, dst = edge_index[0], edge_index[1]
    msg = (a[src] - b[dst]) * edge_weight[:, None]
    agg = jnp.zeros_like(a).at[dst].add(msg)
    out = agg + c
    return jnp.maximum(out, 0.0) if apply_relu else out


def causal_att_net_ref(params, x, edge_index, edge_attr):
    w = edge_attr.reshape(-1)
    h = leconv_ref(x, edge_index, w, params["conv1"], True)
    return leconv_ref(h, edge_index, w, params["conv2"], False)


# ----------------------------------------------------------------------------
if __name__ == "__main__":
    key = jax.random.PRNGKey(0)
    k_x, k_ei, k_ew, k_p1, k_p2 = jax.random.split(key, 5)

    num_nodes = 16
    num_edges = 40
    in_dim = 4
    hidden_dim = 32

    # batch.x, batch.edge_index, batch.edge_attr
    x = jax.random.normal(k_x, (num_nodes, in_dim), jnp.float32)
    edge_index = jax.random.randint(k_ei, (2, num_edges), 0, num_nodes,
                                    dtype=jnp.int32)
    edge_attr = jax.random.normal(k_ew, (num_edges, 1), jnp.float32)
    # TODO(synk): batch.batch (graph-assignment vector) is unused by forward.

    params = {
        "conv1": init_leconv(k_p1, in_dim, hidden_dim),
        "conv2": init_leconv(k_p2, hidden_dim, hidden_dim),
    }

    out = causal_att_net_forward(params, x, edge_index, edge_attr)
    out = jax.block_until_ready(out)

    ref = causal_att_net_ref(params, x, edge_index, edge_attr)
    assert out.shape == (num_nodes, hidden_dim)

    # bf16 MXU path vs f32 reference: normalized max-error check.
    err = float(jnp.max(jnp.abs(out - ref)))
    scale = float(jnp.max(jnp.abs(ref))) + 1e-6
    assert err / scale < 5e-2, f"mismatch vs reference: err={err}, scale={scale}"

    print("KERNEL_OK")
</pallas_src>

<mosaic_0001>
module attributes {stable_mosaic.version = 11 : i64} {
  func.func @_fused_leconv2_kernel(%arg0: i32, %arg1: i32, %arg2: memref<128x128xbf16, #tpu.memory_space<vmem>>, %arg3: memref<64x128xbf16, #tpu.memory_space<vmem>>, %arg4: memref<64x1xf32, #tpu.memory_space<vmem>>, %arg5: memref<128x384xbf16, #tpu.memory_space<vmem>>, %arg6: memref<1x384xf32, #tpu.memory_space<vmem>>, %arg7: memref<128x384xbf16, #tpu.memory_space<vmem>>, %arg8: memref<1x384xf32, #tpu.memory_space<vmem>>, %arg9: memref<64x128xf32, #tpu.memory_space<vmem>>, %arg10: memref<128x128xbf16, #tpu.memory_space<vmem>>, %arg11: memref<128x128xf32, #tpu.memory_space<vmem>>, %arg12: memref<128x128xf32, #tpu.memory_space<vmem>>, %arg13: memref<128x128xbf16, #tpu.memory_space<vmem>>) attributes {dimension_semantics = [#tpu.dimension_semantics<arbitrary>, #tpu.dimension_semantics<arbitrary>], iteration_bounds = array<i64: 2, 2>, scalar_prefetch = 0 : i64, scratch_operands = 4 : i64, tpu.core_type = #tpu.core_type<tc>, window_params = [{pipeline_mode = #tpu.pipeline_mode<synchronous>, transform_indices = @transform_0, window_bounds = array<i64: 128, 128>}, {transform_indices = @transform_1, window_bounds = array<i64: 64, 128>}, {transform_indices = @transform_2, window_bounds = array<i64: 64, 1>}, {pipeline_mode = #tpu.pipeline_mode<synchronous>, transform_indices = @transform_3, window_bounds = array<i64: 128, 384>}, {pipeline_mode = #tpu.pipeline_mode<synchronous>, transform_indices = @transform_4, window_bounds = array<i64: 1, 384>}, {pipeline_mode = #tpu.pipeline_mode<synchronous>, transform_indices = @transform_5, window_bounds = array<i64: 128, 384>}, {pipeline_mode = #tpu.pipeline_mode<synchronous>, transform_indices = @transform_6, window_bounds = array<i64: 1, 384>}, {transform_indices = @transform_7, window_bounds = array<i64: 64, 128>}]} {
    %c0_i32 = arith.constant 0 : i32
    %0 = arith.cmpi eq, %arg0, %c0_i32 : i32
    %c0_i32_0 = arith.constant 0 : i32
    %1 = arith.cmpi eq, %arg1, %c0_i32_0 : i32
    %2 = arith.andi %0, %1 : i1
    %3 = arith.extui %2 : i1 to i32
    %c0_i32_1 = arith.constant 0 : i32
    %4 = arith.cmpi ne, %3, %c0_i32_1 : i32
    scf.if %4 {
      %c0_15 = arith.constant 0 : index
      %c0_16 = arith.constant 0 : index
      %30 = vector.load %arg2[%c0_15, %c0_16] : memref<128x128xbf16, #tpu.memory_space<vmem>>, vector<128x128xbf16>
      %c0_17 = arith.constant 0 : index
      %c0_18 = arith.constant 0 : index
      %31 = vector.load %arg5[%c0_17, %c0_18] : memref<128x384xbf16, #tpu.memory_space<vmem>>, vector<128x384xbf16>
      %cst_19 = arith.constant dense<0.000000e+00> : vector<128x384xf32>
      %32 = tpu.matmul %30, %31, %cst_19 {dimension_numbers = #tpu.dot_dimension_numbers<[1], [0], [0], [1], [0, 0, 1, 1], [], []>} : vector<128x128xbf16>, vector<128x384xbf16>, vector<128x384xf32> -> vector<128x384xf32>
      %c0_20 = arith.constant 0 : index
      %c0_21 = arith.constant 0 : index
      %33 = vector.load %arg6[%c0_20, %c0_21] : memref<1x384xf32, #tpu.memory_space<vmem>>, vector<1x384xf32>
      %34 = vector.broadcast %33 : vector<1x384xf32> to vector<128x384xf32>
      %35 = arith.addf %32, %34 : vector<128x384xf32>
      %36 = vector.extract_strided_slice %35 {offsets = [0, 0], sizes = [128, 128], strides = [1, 1]} : vector<128x384xf32> to vector<128x128xf32>
      %37 = arith.truncf %36 : vector<128x128xf32> to vector<128x128xbf16>
      %c0_22 = arith.constant 0 : index
      %c0_23 = arith.constant 0 : index
      %38 = vector.load %arg10[%c0_22, %c0_23] : memref<128x128xbf16, #tpu.memory_space<vmem>>, vector<128x128xbf16>
      tpu.vector_store %arg10[%c0_22, %c0_23], %37 {strides = array<i32>} : memref<128x128xbf16, #tpu.memory_space<vmem>>, vector<128x128xbf16>,
      %39 = vector.extract_strided_slice %35 {offsets = [0, 128], sizes = [128, 128], strides = [1, 1]} : vector<128x384xf32> to vector<128x128xf32>
      %c0_24 = arith.constant 0 : index
      %c0_25 = arith.constant 0 : index
      %40 = vector.load %arg11[%c0_24, %c0_25] : memref<128x128xf32, #tpu.memory_space<vmem>>, vector<128x128xf32>
      tpu.vector_store %arg11[%c0_24, %c0_25], %39 {strides = array<i32>} : memref<128x128xf32, #tpu.memory_space<vmem>>, vector<128x128xf32>,
      %41 = vector.extract_strided_slice %35 {offsets = [0, 256], sizes = [128, 128], strides = [1, 1]} : vector<128x384xf32> to vector<128x128xf32>
      %c0_26 = arith.constant 0 : index
      %c0_27 = arith.constant 0 : index
      %42 = vector.load %arg12[%c0_26, %c0_27] : memref<128x128xf32, #tpu.memory_space<vmem>>, vector<128x128xf32>
      tpu.vector_store %arg12[%c0_26, %c0_27], %41 {strides = array<i32>} : memref<128x128xf32, #tpu.memory_space<vmem>>, vector<128x128xf32>,
    } else {
    }
    %c1_i32 = arith.constant 1 : i32
    %5 = arith.cmpi eq, %arg0, %c1_i32 : i32
    %c0_i32_2 = arith.constant 0 : i32
    %6 = arith.cmpi eq, %arg1, %c0_i32_2 : i32
    %7 = arith.andi %5, %6 : i1
    %8 = arith.extui %7 : i1 to i32
    %c0_i32_3 = arith.constant 0 : i32
    %9 = arith.cmpi ne, %8, %c0_i32_3 : i32
    scf.if %9 {
      %c0_15 = arith.constant 0 : index
      %c0_16 = arith.constant 0 : index
      %30 = vector.load %arg13[%c0_15, %c0_16] : memref<128x128xbf16, #tpu.memory_space<vmem>>, vector<128x128xbf16>
      %c0_17 = arith.constant 0 : index
      %c0_18 = arith.constant 0 : index
      %31 = vector.load %arg7[%c0_17, %c0_18] : memref<128x384xbf16, #tpu.memory_space<vmem>>, vector<128x384xbf16>
      %cst_19 = arith.constant dense<0.000000e+00> : vector<128x384xf32>
      %32 = tpu.matmul %30, %31, %cst_19 {dimension_numbers = #tpu.dot_dimension_numbers<[1], [0], [0], [1], [0, 0, 1, 1], [], []>} : vector<128x128xbf16>, vector<128x384xbf16>, vector<128x384xf32> -> vector<128x384xf32>
      %c0_20 = arith.constant 0 : index
      %c0_21 = arith.constant 0 : index
      %33 = vector.load %arg8[%c0_20, %c0_21] : memref<1x384xf32, #tpu.memory_space<vmem>>, vector<1x384xf32>
      %34 = vector.broadcast %33 : vector<1x384xf32> to vector<128x384xf32>
      %35 = arith.addf %32, %34 : vector<128x384xf32>
      %36 = vector.extract_strided_slice %35 {offsets = [0, 0], sizes = [128, 128], strides = [1, 1]} : vector<128x384xf32> to vector<128x128xf32>
      %37 = arith.truncf %36 : vector<128x128xf32> to vector<128x128xbf16>
      %c0_22 = arith.constant 0 : index
      %c0_23 = arith.constant 0 : index
      %38 = vector.load %arg10[%c0_22, %c0_23] : memref<128x128xbf16, #tpu.memory_space<vmem>>, vector<128x128xbf16>
      tpu.vector_store %arg10[%c0_22, %c0_23], %37 {strides = array<i32>} : memref<128x128xbf16, #tpu.memory_space<vmem>>, vector<128x128xbf16>,
      %39 = vector.extract_strided_slice %35 {offsets = [0, 128], sizes = [128, 128], strides = [1, 1]} : vector<128x384xf32> to vector<128x128xf32>
      %c0_24 = arith.constant 0 : index
      %c0_25 = arith.constant 0 : index
      %40 = vector.load %arg11[%c0_24, %c0_25] : memref<128x128xf32, #tpu.memory_space<vmem>>, vector<128x128xf32>
      tpu.vector_store %arg11[%c0_24, %c0_25], %39 {strides = array<i32>} : memref<128x128xf32, #tpu.memory_space<vmem>>, vector<128x128xf32>,
      %41 = vector.extract_strided_slice %35 {offsets = [0, 256], sizes = [128, 128], strides = [1, 1]} : vector<128x384xf32> to vector<128x128xf32>
      %c0_26 = arith.constant 0 : index
      %c0_27 = arith.constant 0 : index
      %42 = vector.load %arg12[%c0_26, %c0_27] : memref<128x128xf32, #tpu.memory_space<vmem>>, vector<128x128xf32>
      tpu.vector_store %arg12[%c0_26, %c0_27], %41 {strides = array<i32>} : memref<128x128xf32, #tpu.memory_space<vmem>>, vector<128x128xf32>,
    } else {
    }
    %c0 = arith.constant 0 : index
    %c0_4 = arith.constant 0 : index
    %10 = vector.load %arg3[%c0, %c0_4] : memref<64x128xbf16, #tpu.memory_space<vmem>>, vector<64x128xbf16>
    %c0_5 = arith.constant 0 : index
    %c0_6 = arith.constant 0 : index
    %11 = vector.load %arg10[%c0_5, %c0_6] : memref<128x128xbf16, #tpu.memory_space<vmem>>, vector<128x128xbf16>
    %cst = arith.constant dense<0.000000e+00> : vector<64x128xf32>
    %12 = tpu.matmul %10, %11, %cst {dimension_numbers = #tpu.dot_dimension_numbers<[1], [0], [0], [1], [0, 0, 1, 1], [], []>} : vector<64x128xbf16>, vector<128x128xbf16>, vector<64x128xf32> -> vector<64x128xf32>
    %c64_i32 = arith.constant 64 : i32
    %13 = arith.muli %arg1, %c64_i32 : i32
    %14 = tpu.assume_multiple %13, 64 : i32
    %c0_7 = arith.constant 0 : index
    %c0_8 = arith.constant 0 : index
    %15 = vector.load %arg4[%c0_7, %c0_8] : memref<64x1xf32, #tpu.memory_space<vmem>>, vector<64x1xf32>
    %16 = arith.index_cast %14 : i32 to index
    %c0_9 = arith.constant 0 : index
    %17 = vector.load %arg11[%16, %c0_9] : memref<128x128xf32, #tpu.memory_space<vmem>>, vector<64x128xf32>
    %18 = vector.broadcast %15 : vector<64x1xf32> to vector<64x128xf32>
    %19 = arith.mulf %18, %17 : vector<64x128xf32>
    %20 = arith.subf %12, %19 : vector<64x128xf32>
    %21 = arith.index_cast %14 : i32 to index
    %c0_10 = arith.constant 0 : index
    %22 = vector.load %arg12[%21, %c0_10] : memref<128x128xf32, #tpu.memory_space<vmem>>, vector<64x128xf32>
    %23 = arith.addf %20, %22 : vector<64x128xf32>
    %c0_i32_11 = arith.constant 0 : i32
    %24 = arith.cmpi eq, %arg0, %c0_i32_11 : i32
    %25 = arith.extui %24 : i1 to i32
    %c0_i32_12 = arith.constant 0 : i32
    %26 = arith.cmpi ne, %25, %c0_i32_12 : i32
    scf.if %26 {
      %cst_15 = arith.constant 0.000000e+00 : f32
      %30 = vector.broadcast %cst_15 : f32 to vector<64x128xf32>
      %31 = arith.maximumf %23, %30 : vector<64x128xf32>
      %32 = arith.truncf %31 : vector<64x128xf32> to vector<64x128xbf16>
      %33 = arith.index_cast %14 : i32 to index
      %c0_16 = arith.constant 0 : index
      %34 = vector.load %arg13[%33, %c0_16] : memref<128x128xbf16, #tpu.memory_space<vmem>>, vector<64x128xbf16>
      tpu.vector_store %arg13[%33, %c0_16], %32 {strides = array<i32>} : memref<128x128xbf16, #tpu.memory_space<vmem>>, vector<64x128xbf16>,
      %cst_17 = arith.constant 0.000000e+00 : f32
      %35 = vector.broadcast %cst_17 : f32 to vector<64x128xf32>
      %c0_18 = arith.constant 0 : index
      %c0_19 = arith.constant 0 : index
      %36 = vector.load %arg9[%c0_18, %c0_19] : memref<64x128xf32, #tpu.memory_space<vmem>>, vector<64x128xf32>
      tpu.vector_store %arg9[%c0_18, %c0_19], %35 {strides = array<i32>} : memref<64x128xf32, #tpu.memory_space<vmem>>, vector<64x128xf32>,
    } else {
    }
    %c1_i32_13 = arith.constant 1 : i32
    %27 = arith.cmpi eq, %arg0, %c1_i32_13 : i32
    %28 = arith.extui %27 : i1 to i32
    %c0_i32_14 = arith.constant 0 : i32
    %29 = arith.cmpi ne, %28, %c0_i32_14 : i32
    scf.if %29 {
      %c0_15 = arith.constant 0 : index
      %c0_16 = arith.constant 0 : index
      %30 = vector.load %arg9[%c0_15, %c0_16] : memref<64x128xf32, #tpu.memory_space<vmem>>, vector<64x128xf32>
      tpu.vector_store %arg9[%c0_15, %c0_16], %23 {strides = array<i32>} : memref<64x128xf32, #tpu.memory_space<vmem>>, vector<64x128xf32>,
    } else {
    }
    return
  }
  func.func @transform_0(%arg0: i32, %arg1: i32) -> (i32, i32) {
    %c0_i32 = arith.constant 0 : i32
    %c0_i32_0 = arith.constant 0 : i32
    %c0_i32_1 = arith.constant 0 : i32
    return %c0_i32, %c0_i32_0 : i32, i32
  }
  func.func @transform_1(%arg0: i32, %arg1: i32) -> (i32, i32) {
    %c0_i32 = arith.constant 0 : i32
    %c0_i32_0 = arith.constant 0 : i32
    return %arg1, %c0_i32 : i32, i32
  }
  func.func @transform_2(%arg0: i32, %arg1: i32) -> (i32, i32) {
    %c0_i32 = arith.constant 0 : i32
    %c0_i32_0 = arith.constant 0 : i32
    return %arg1, %c0_i32 : i32, i32
  }
  func.func @transform_3(%arg0: i32, %arg1: i32) -> (i32, i32) {
    %c0_i32 = arith.constant 0 : i32
    %c0_i32_0 = arith.constant 0 : i32
    %c0_i32_1 = arith.constant 0 : i32
    return %c0_i32, %c0_i32_0 : i32, i32
  }
  func.func @transform_4(%arg0: i32, %arg1: i32) -> (i32, i32) {
    %c0_i32 = arith.constant 0 : i32
    %c0_i32_0 = arith.constant 0 : i32
    %c0_i32_1 = arith.constant 0 : i32
    return %c0_i32, %c0_i32_0 : i32, i32
  }
  func.func @transform_5(%arg0: i32, %arg1: i32) -> (i32, i32) {
    %c0_i32 = arith.constant 0 : i32
    %c0_i32_0 = arith.constant 0 : i32
    %c0_i32_1 = arith.constant 0 : i32
    return %c0_i32, %c0_i32_0 : i32, i32
  }
  func.func @transform_6(%arg0: i32, %arg1: i32) -> (i32, i32) {
    %c0_i32 = arith.constant 0 : i32
    %c0_i32_0 = arith.constant 0 : i32
    %c0_i32_1 = arith.constant 0 : i32
    return %c0_i32, %c0_i32_0 : i32, i32
  }
  func.func @transform_7(%arg0: i32, %arg1: i32) -> (i32, i32) {
    %c0_i32 = arith.constant 0 : i32
    %c0_i32_0 = arith.constant 0 : i32
    return %arg1, %c0_i32 : i32, i32
  }
}

</mosaic_0001>

<llo_original>
// kernel: tpu_custom_call.1
$region0: #{tpu_custom_call.1}
  #allocation0 [shape = 'u32[]', space=smem, size = 0x4, offset = 0x4, fixed_abs, tag = 'smem constant byte address 0x4 - core index']
  #allocation1 [shape = 'u32[144,128]{1,0:T(1,128)}', space=vmem, size = 0x12000, scoped, tag = 'internal scratch']
  #allocation2 [shape = 'bf16[128,128]{1,0:T(16,128)(2,1)}', space=vmem, size = 0x8000, scoped, tag = 'scratch operand']
  #allocation3 [shape = 'f32[128,128]{1,0:T(8,128)}', space=vmem, size = 0x10000, scoped, tag = 'scratch operand']
  #allocation4 [shape = 'f32[128,128]{1,0:T(8,128)}', space=vmem, size = 0x10000, scoped, tag = 'scratch operand']
  #allocation5 [shape = 'bf16[128,128]{1,0:T(16,128)(2,1)}', space=vmem, size = 0x8000, scoped, tag = 'scratch operand']
  %s0 = inlined_call_operand.vmem [shape: bf16[128,128], index: 0, kind: input, shape index: {}]
  %s1 = inlined_call_operand.vmem [shape: bf16[128,128], index: 1, kind: input, shape index: {}]
  %s2 = inlined_call_operand.vmem [shape: f32[128,1], index: 2, kind: input, shape index: {}]
  %s3 = inlined_call_operand.hbm [shape: bf16[128,384], index: 3, kind: input, shape index: {}]
  %s4 = inlined_call_operand.vmem [shape: f32[1,384], index: 4, kind: input, shape index: {}]
  %s5 = inlined_call_operand.hbm [shape: bf16[128,384], index: 5, kind: input, shape index: {}]
  %s6 = inlined_call_operand.vmem [shape: f32[1,384], index: 6, kind: input, shape index: {}]
  %s7 = inlined_call_operand.hbm [shape: f32[128,128], index: 7, kind: output, shape index: {}]
  %s8 = sld [smem:[#allocation0]]
  $region85: #{tpu_custom_call.1} parent=0
    _
  %s10 = ssub.s32 1, %s8
  %s11 = scalar_select 0, %s10, %s8
  $region1: #{tpu_custom_call.1} parent=0
    #allocation6 [shape = 'u8[98304]{0}', space=vmem, size = 0x18000, scoped, tag = 'input window, operand 3, single buffered']
    #allocation7 [shape = 's32[2]{0}', space=sflag, size = 0x8, scoped, tag = 'scoped memory for tpu_custom_call.1']
    #allocation8 [shape = 's32[2]{0}', space=sflag, size = 0x8, scoped, tag = 'scoped memory for tpu_custom_call.1']
    #allocation9 [shape = 'u8[98304]{0}', space=vmem, size = 0x18000, scoped, tag = 'input window, operand 5, single buffered']
    #allocation10 [shape = 's32[1]{0}', space=sflag, size = 0x4, scoped, tag = 'scoped memory for tpu_custom_call.1']
    #allocation11 [shape = 'u8[65536]{0}', space=vmem, size = 0x10000, scoped, tag = 'output window, operand 0']
    %12 = vsyncpa [#allocation7], 0
    %13 = vsyncpa [#allocation10], 0
    %14 = vsyncpa [#allocation8], 0
    %s15 = scalar_lea.sflag [#allocation8], 1
    %16 = vsyncpa %s15, 0
    loop: start=0, step=1, limit=6
    $region2: #{tpu_custom_call.1} parent=1 // loop_pre_header
      _
    $region3: #{tpu_custom_call.1} parent=1 // loop_header
      %s18 = sphi 0, %s22
      %p19 = scmp.ge.s32.totalorder %s18, 6
      %s25 = sphi 0, %s37
      %s26 = sphi 0, %s33
      %s27 = sphi 0, %s25
      %s28 = sphi 0, %s26
      %s29 = sphi 0, %s27
      %s30 = sphi 0, %s28
      %s38 = sphi 0, %s38
      %s40 = sphi 0, %s38
      %s41 = sphi 0, %s40
      %s55 = sphi 0, %s41
      %s61 = sphi 0, %s63
      %s64 = sphi 0, %s61
      %s65 = sphi 0, %s64
      %s81 = sphi 0, %s65
      %s87 = sphi 0, %s89
      %s90 = sphi 0, %s87
      %s91 = sphi 0, %s90
      %s107 = sphi 0, %s91
      %s111 = sphi 0, %s111
      %s113 = sphi 0, %s111
      %s114 = sphi 0, %s113
      %s128 = sphi 0, %s114
      %s132 = sphi 0, %s132
      %s134 = sphi 0, %s132
      %s135 = sphi 0, %s134
      %s149 = sphi 0, %s135
      %s153 = sphi 0, %s153
      %s155 = sphi 0, %s153
      %s156 = sphi 0, %s155
      %s170 = sphi 0, %s156
      %s174 = sphi 0, %s174
      %s176 = sphi 0, %s174
      %s177 = sphi 0, %s176
      %s191 = sphi 0, %s177
      %s197 = sphi 0, %s199
      %s200 = sphi 0, %s197
      %s201 = sphi 0, %s200
      %s217 = sphi 0, %s201
    $region4: #{tpu_custom_call.1} parent=1 // loop_header_branch
      %21 = sbr.rel (%p19) target = $region8
    $region5: #{tpu_custom_call.1} parent=1 // loop_body
      %s23 = ssub.s32 %s18, 1
      %s24 = ssub.s32 %s18, 2
      %s31 = sadd.s32 1, %s26
      %p32 = scmp.ge.s32.totalorder %s31, 2
      %s33 = scalar_select %p32, 0, %s31
      %s34 = sadd.s32 1, %s25
      %s35 = scalar_select %p32, %s34, %s25
      %p36 = scmp.ge.s32.totalorder %s35, 2
      %s37 = scalar_select %p36, 0, %s35
      %s39 = sadd.s32 %s38, 1
      %p42 = scmp.eq.s32.totalorder %s18, 3
      %p43 = scmp.ne.s32.totalorder %s38, %s40
      %p44 = scmp.eq.s32.totalorder %s18, 0
      %p45 = por %p43, %p44
      %p46 = scmp.ne.s32.totalorder %s38, %s40
      %p47 = scmp.eq.s32.totalorder %s23, 3
      %p48 = por %p46, %p47
      %p49 = scmp.ne.s32.totalorder %s40, %s41
      %p50 = scmp.eq.s32.totalorder %s23, 0
      %p51 = por %p49, %p50
      %p52 = scmp.ne.s32.totalorder %s40, %s41
      %p53 = scmp.eq.s32.totalorder %s24, 3
      %p54 = por %p52, %p53
      %p56 = scmp.ne.s32.totalorder %s41, %s55
      %p57 = scmp.eq.s32.totalorder %s24, 0
      %p58 = por %p56, %p57
      %s59 = ssub.s32 %s26, %s33
      %p60 = scmp.eq.s32.totalorder %s59, 0
      %s62 = sadd.s32 %s61, 1
      %s63 = scalar_select %p60, %s61, %s62
      %p66 = pneg %p60
      %p67 = scmp.eq.s32.totalorder %s18, 3
      %p68 = por %p66, %p67
      %p69 = scmp.ne.s32.totalorder %s61, %s64
      %p70 = scmp.eq.s32.totalorder %s18, 0
      %p71 = por %p69, %p70
      %p72 = scmp.ne.s32.totalorder %s61, %s64
      %p73 = scmp.eq.s32.totalorder %s23, 3
      %p74 = por %p72, %p73
      %p75 = scmp.ne.s32.totalorder %s64, %s65
      %p76 = scmp.eq.s32.totalorder %s23, 0
      %p77 = por %p75, %p76
      %p78 = scmp.ne.s32.totalorder %s64, %s65
      %p79 = scmp.eq.s32.totalorder %s24, 3
      %p80 = por %p78, %p79
      %p82 = scmp.ne.s32.totalorder %s65, %s81
      %p83 = scmp.eq.s32.totalorder %s24, 0
      %p84 = por %p82, %p83
      %s85 = ssub.s32 %s26, %s33
      %p86 = scmp.eq.s32.totalorder %s85, 0
      %s88 = sadd.s32 %s87, 1
      %s89 = scalar_select %p86, %s87, %s88
      %p92 = pneg %p86
      %p93 = scmp.eq.s32.totalorder %s18, 3
      %p94 = por %p92, %p93
      %p95 = scmp.ne.s32.totalorder %s87, %s90
      %p96 = scmp.eq.s32.totalorder %s18, 0
      %p97 = por %p95, %p96
      %p98 = scmp.ne.s32.totalorder %s87, %s90
      %p99 = scmp.eq.s32.totalorder %s23, 3
      %p100 = por %p98, %p99
      %p101 = scmp.ne.s32.totalorder %s90, %s91
      %p102 = scmp.eq.s32.totalorder %s23, 0
      %p103 = por %p101, %p102
      %p104 = scmp.ne.s32.totalorder %s90, %s91
      %p105 = scmp.eq.s32.totalorder %s24, 3
      %p106 = por %p104, %p105
      %p108 = scmp.ne.s32.totalorder %s91, %s107
      %p109 = scmp.eq.s32.totalorder %s24, 0
      %p110 = por %p108, %p109
      %s112 = sadd.s32 %s111, 1
      %p115 = scmp.eq.s32.totalorder %s18, 3
      %p116 = scmp.ne.s32.totalorder %s111, %s113
      %p117 = scmp.eq.s32.totalorder %s18, 0
      %p118 = por %p116, %p117
      %p119 = scmp.ne.s32.totalorder %s111, %s113
      %p120 = scmp.eq.s32.totalorder %s23, 3
      %p121 = por %p119, %p120
      %p122 = scmp.ne.s32.totalorder %s113, %s114
      %p123 = scmp.eq.s32.totalorder %s23, 0
      %p124 = por %p122, %p123
      %p125 = scmp.ne.s32.totalorder %s113, %s114
      %p126 = scmp.eq.s32.totalorder %s24, 3
      %p127 = por %p125, %p126
      %p129 = scmp.ne.s32.totalorder %s114, %s128
      %p130 = scmp.eq.s32.totalorder %s24, 0
      %p131 = por %p129, %p130
      %s133 = sadd.s32 %s132, 1
      %p136 = scmp.eq.s32.totalorder %s18, 3
      %p137 = scmp.ne.s32.totalorder %s132, %s134
      %p138 = scmp.eq.s32.totalorder %s18, 0
      %p139 = por %p137, %p138
      %p140 = scmp.ne.s32.totalorder %s132, %s134
      %p141 = scmp.eq.s32.totalorder %s23, 3
      %p142 = por %p140, %p141
      %p143 = scmp.ne.s32.totalorder %s134, %s135
      %p144 = scmp.eq.s32.totalorder %s23, 0
      %p145 = por %p143, %p144
      %p146 = scmp.ne.s32.totalorder %s134, %s135
      %p147 = scmp.eq.s32.totalorder %s24, 3
      %p148 = por %p146, %p147
      %p150 = scmp.ne.s32.totalorder %s135, %s149
      %p151 = scmp.eq.s32.totalorder %s24, 0
      %p152 = por %p150, %p151
      %s154 = sadd.s32 %s153, 1
      %p157 = scmp.eq.s32.totalorder %s18, 3
      %p158 = scmp.ne.s32.totalorder %s153, %s155
      %p159 = scmp.eq.s32.totalorder %s18, 0
      %p160 = por %p158, %p159
      %p161 = scmp.ne.s32.totalorder %s153, %s155
      %p162 = scmp.eq.s32.totalorder %s23, 3
      %p163 = por %p161, %p162
      %p164 = scmp.ne.s32.totalorder %s155, %s156
      %p165 = scmp.eq.s32.totalorder %s23, 0
      %p166 = por %p164, %p165
      %p167 = scmp.ne.s32.totalorder %s155, %s156
      %p168 = scmp.eq.s32.totalorder %s24, 3
      %p169 = por %p167, %p168
      %p171 = scmp.ne.s32.totalorder %s156, %s170
      %p172 = scmp.eq.s32.totalorder %s24, 0
      %p173 = por %p171, %p172
      %s175 = sadd.s32 %s174, 1
      %p178 = scmp.eq.s32.totalorder %s18, 3
      %p179 = scmp.ne.s32.totalorder %s174, %s176
      %p180 = scmp.eq.s32.totalorder %s18, 0
      %p181 = por %p179, %p180
      %p182 = scmp.ne.s32.totalorder %s174, %s176
      %p183 = scmp.eq.s32.totalorder %s23, 3
      %p184 = por %p182, %p183
      %p185 = scmp.ne.s32.totalorder %s176, %s177
      %p186 = scmp.eq.s32.totalorder %s23, 0
      %p187 = por %p185, %p186
      %p188 = scmp.ne.s32.totalorder %s176, %s177
      %p189 = scmp.eq.s32.totalorder %s24, 3
      %p190 = por %p188, %p189
      %p192 = scmp.ne.s32.totalorder %s177, %s191
      %p193 = scmp.eq.s32.totalorder %s24, 0
      %p194 = por %p192, %p193
      %s195 = ssub.s32 %s26, %s33
      %p196 = scmp.eq.s32.totalorder %s195, 0
      %s198 = sadd.s32 %s197, 1
      %s199 = scalar_select %p196, %s197, %s198
      %p202 = pneg %p196
      %p203 = scmp.eq.s32.totalorder %s18, 3
      %p204 = por %p202, %p203
      %p205 = scmp.ne.s32.totalorder %s197, %s200
      %p206 = scmp.eq.s32.totalorder %s18, 0
      %p207 = por %p205, %p206
      %p208 = scmp.ne.s32.totalorder %s197, %s200
      %p209 = scmp.eq.s32.totalorder %s23, 3
      %p210 = por %p208, %p209
      %p211 = scmp.ne.s32.totalorder %s200, %s201
      %p212 = scmp.eq.s32.totalorder %s23, 0
      %p213 = por %p211, %p212
      %p214 = scmp.ne.s32.totalorder %s200, %s201
      %p215 = scmp.eq.s32.totalorder %s24, 3
      %p216 = por %p214, %p215
      %p218 = scmp.ne.s32.totalorder %s201, %s217
      %p219 = scmp.eq.s32.totalorder %s24, 0
      %p220 = por %p218, %p219
      %p221 = scmp.le.s32.totalorder 1, %s18
      %p222 = scmp.lt.s32.totalorder %s18, 5
      %p223 = pnand %p221, %p222
      %p224 = pneg %p223
      // Predicated region
      $region9: #{tpu_custom_call.1} parent=5 // pred_check
        _
      $region10: #{tpu_custom_call.1} parent=5 // pred_check_branch
        %226 = sbr.rel (%p223) target = $region12
      $region11: #{tpu_custom_call.1} parent=5 // pred_region
        %s227 = ssub.s32 %s18, 1
        // Predicated region
        $region13: #{tpu_custom_call.1} parent=11 // pred_check
          %p228 = pneg %p51
        $region14: #{tpu_custom_call.1} parent=11 // pred_check_branch
          %230 = sbr.rel (%p228) target = $region16
        $region15: #{tpu_custom_call.1} parent=11 // pred_region
          _
        $region16: #{tpu_custom_call.1} parent=11 // pred_fallthru
          _
        // Predicated region
        $region17: #{tpu_custom_call.1} parent=11 // pred_check
          %p231 = pneg %p124
        $region18: #{tpu_custom_call.1} parent=11 // pred_check_branch
          %233 = sbr.rel (%p231) target = $region20
        $region19: #{tpu_custom_call.1} parent=11 // pred_region
          %s235 = ssub.s32 3072, 3072
          %236 = vsyncadd [#allocation7], %s235
          %s237 = sshll.u32 [#allocation6], 4
          %s238 = int_to_ptr.vmem [resolvable:$true] %s237
          %243 = dma.hbm_to_vmem [thread:$0]  %s3, 3072, %s238, [#allocation7], 192, 192, 12
        $region20: #{tpu_custom_call.1} parent=11 // pred_fallthru
          _
        // Predicated region
        $region21: #{tpu_custom_call.1} parent=11 // pred_check
          %p244 = pneg %p145
        $region22: #{tpu_custom_call.1} parent=11 // pred_check_branch
          %246 = sbr.rel (%p244) target = $region24
        $region23: #{tpu_custom_call.1} parent=11 // pred_region
          _
        $region24: #{tpu_custom_call.1} parent=11 // pred_fallthru
          _
        // Predicated region
        $region25: #{tpu_custom_call.1} parent=11 // pred_check
          %p247 = pneg %p166
        $region26: #{tpu_custom_call.1} parent=11 // pred_check_branch
          %249 = sbr.rel (%p247) target = $region28
        $region27: #{tpu_custom_call.1} parent=11 // pred_region
          %s251 = ssub.s32 3072, 3072
          %252 = vsyncadd [#allocation10], %s251
          %s253 = sshll.u32 [#allocation9], 4
          %s254 = int_to_ptr.vmem [resolvable:$true] %s253
          %259 = dma.hbm_to_vmem [thread:$0]  %s5, 3072, %s254, [#allocation10], 192, 192, 12
        $region28: #{tpu_custom_call.1} parent=11 // pred_fallthru
          _
        // Predicated region
        $region29: #{tpu_custom_call.1} parent=11 // pred_check
          %p260 = pneg %p187
        $region30: #{tpu_custom_call.1} parent=11 // pred_check_branch
          %262 = sbr.rel (%p260) target = $region32
        $region31: #{tpu_custom_call.1} parent=11 // pred_region
          _
        $region32: #{tpu_custom_call.1} parent=11 // pred_fallthru
          _
      $region12: #{tpu_custom_call.1} parent=5 // pred_fallthru
        _
      %p263 = scmp.lt.s32.totalorder %s18, 4
      // Predicated region
      $region33: #{tpu_custom_call.1} parent=5 // pred_check
        %p264 = pneg %p263
      $region34: #{tpu_custom_call.1} parent=5 // pred_check_branch
        %266 = sbr.rel (%p264) target = $region36
      $region35: #{tpu_custom_call.1} parent=5 // pred_region
        // Predicated region
        $region37: #{tpu_custom_call.1} parent=35 // pred_check
          %p267 = pneg %p71
        $region38: #{tpu_custom_call.1} parent=35 // pred_check_branch
          %269 = sbr.rel (%p267) target = $region40
        $region39: #{tpu_custom_call.1} parent=35 // pred_region
          %s270 = smul.u32 8, %s26
          %p271 = scmp.lt.s32.totalorder %s270, 15
          %s272 = scalar_select %p271, %s270, 15
          %s273 = smul.addr %s272, 4
          %s274 = scalar_lea.vmem %s1, %s273
          %s275 = smul.u32 8, %s26
        $region40: #{tpu_custom_call.1} parent=35 // pred_fallthru
          _
        // Predicated region
        $region41: #{tpu_custom_call.1} parent=35 // pred_check
          %p276 = pneg %p97
        $region42: #{tpu_custom_call.1} parent=35 // pred_check_branch
          %278 = sbr.rel (%p276) target = $region44
        $region43: #{tpu_custom_call.1} parent=35 // pred_region
          %s279 = smul.u32 8, %s26
          %p280 = scmp.lt.s32.totalorder %s279, 15
          %s281 = scalar_select %p280, %s279, 15
          %s282 = smul.addr %s281, 8
          %s283 = scalar_lea.vmem %s2, %s282
          %s284 = smul.u32 8, %s26
        $region44: #{tpu_custom_call.1} parent=35 // pred_fallthru
          _
      $region36: #{tpu_custom_call.1} parent=5 // pred_fallthru
        _
      %p285 = scmp.le.s32.totalorder 1, %s18
      %p286 = scmp.lt.s32.totalorder %s18, 5
      %p287 = pnand %p285, %p286
      %p288 = pneg %p287
      // Predicated region
      $region45: #{tpu_custom_call.1} parent=5 // pred_check
        _
      $region46: #{tpu_custom_call.1} parent=5 // pred_check_branch
        %290 = sbr.rel (%p287) target = $region48
      $region47: #{tpu_custom_call.1} parent=5 // pred_region
        %s291 = ssub.s32 %s18, 1
        // Predicated region
        $region49: #{tpu_custom_call.1} parent=47 // pred_check
          %p292 = pneg %p124
        $region50: #{tpu_custom_call.1} parent=47 // pred_check_branch
          %294 = sbr.rel (%p292) target = $region52
        $region51: #{tpu_custom_call.1} parent=47 // pred_region
          %295 = dma.done [#allocation7], 3072
        $region52: #{tpu_custom_call.1} parent=47 // pred_fallthru
          _
        // Predicated region
        $region53: #{tpu_custom_call.1} parent=47 // pred_check
          %p296 = pneg %p166
        $region54: #{tpu_custom_call.1} parent=47 // pred_check_branch
          %298 = sbr.rel (%p296) target = $region56
        $region55: #{tpu_custom_call.1} parent=47 // pred_region
          %299 = dma.done [#allocation10], 3072
        $region56: #{tpu_custom_call.1} parent=47 // pred_fallthru
          _
        %p300 = pneg %p51
        %p301 = pneg %p48
        %s302 = smul.u32 8, %s28
        %p303 = scmp.lt.s32.totalorder %s302, 15
        %s304 = scalar_select %p303, %s302, 15
        %s305 = smul.addr %s304, 4
        %s306 = scalar_lea.vmem %s1, %s305
        %p307 = pneg %p77
        %p308 = pneg %p74
        %s309 = smul.u32 8, %s28
        %p310 = scmp.lt.s32.totalorder %s309, 15
        %s311 = scalar_select %p310, %s309, 15
        %s312 = smul.addr %s311, 8
        %s313 = scalar_lea.vmem %s2, %s312
        %p314 = pneg %p103
        %p315 = pneg %p100
        %p316 = pneg %p124
        %p317 = pneg %p121
        %p318 = pneg %p145
        %p319 = pneg %p142
        %p320 = pneg %p166
        %p321 = pneg %p163
        %p322 = pneg %p187
        %p323 = pneg %p184
        %p324 = pneg %p213
        %p325 = pneg %p210
        %s326 = sand.u32 %s200, 1
        %s327 = scalar_lea.sflag [#allocation8], %s326
        %s328 = sand.u32 %s200, 1
        %s329 = smul.addr %s328, 64
        %s330 = scalar_lea.vmem [#allocation11], %s329
        %s331 = smul.u32 8, %s28
        %p332 = scmp.lt.s32.totalorder %s331, 15
        %s333 = scalar_select %p332, %s331, 15
        %s334 = smul.addr %s333, 4
        %s335 = scalar_lea.vmem %s1, %s334
        %s336 = smul.u32 8, %s28
        %s337 = smul.u32 8, %s28
        %p338 = scmp.lt.s32.totalorder %s337, 15
        %s339 = scalar_select %p338, %s337, 15
        %s340 = smul.addr %s339, 8
        %s341 = scalar_lea.vmem %s2, %s340
        %s342 = smul.u32 8, %s28
        %s343 = smul.u32 8, %s28
        %p345 = scmp.eq.s32.totalorder %s27, 0
        %p346 = scmp.eq.s32.totalorder %s28, 0
        %p347 = pnand %p345, %p346
        %p348 = pneg %p347
        // Predicated region
        $region57: #{tpu_custom_call.1} parent=47 // pred_check
          _
        $region58: #{tpu_custom_call.1} parent=47 // pred_check_branch
          %350 = sbr.rel (%p347) target = $region60
        $region59: #{tpu_custom_call.1} parent=47 // pred_region
          %v351 = vld [vmem:[%s0] sm:$0xf]
          %v352 = vld [vmem:[%s0 + $0x4] sm:$0xf]
          %v353 = vld [vmem:[%s0 + $0x8] sm:$0xf]
          %v354 = vld [vmem:[%s0 + $0xc] sm:$0xf]
          %v355 = vld [vmem:[%s0 + $0x10] sm:$0xf]
          %v356 = vld [vmem:[%s0 + $0x14] sm:$0xf]
          %v357 = vld [vmem:[%s0 + $0x18] sm:$0xf]
          %v358 = vld [vmem:[%s0 + $0x1c] sm:$0xf]
          %v359 = vld [vmem:[%s0 + $0x20] sm:$0xf]
          %v360 = vld [vmem:[%s0 + $0x24] sm:$0xf]
          %v361 = vld [vmem:[%s0 + $0x28] sm:$0xf]
          %v362 = vld [vmem:[%s0 + $0x2c] sm:$0xf]
          %v363 = vld [vmem:[%s0 + $0x30] sm:$0xf]
          %v364 = vld [vmem:[%s0 + $0x34] sm:$0xf]
          %v365 = vld [vmem:[%s0 + $0x38] sm:$0xf]
          %v366 = vld [vmem:[%s0 + $0x3c] sm:$0xf]
          %v367 = vld [vmem:[#allocation6] sm:$0xff]
          %v368 = vld [vmem:[#allocation6 + $0x8] sm:$0xf]
          %v369 = vld [vmem:[#allocation6 + $0xc] sm:$0xff]
          %v370 = vld [vmem:[#allocation6 + $0x14] sm:$0xf]
          %v371 = vld [vmem:[#allocation6 + $0x18] sm:$0xff]
          %v372 = vld [vmem:[#allocation6 + $0x20] sm:$0xf]
          %v373 = vld [vmem:[#allocation6 + $0x24] sm:$0xff]
          %v374 = vld [vmem:[#allocation6 + $0x2c] sm:$0xf]
          %v375 = vld [vmem:[#allocation6 + $0x30] sm:$0xff]
          %v376 = vld [vmem:[#allocation6 + $0x38] sm:$0xf]
          %v377 = vld [vmem:[#allocation6 + $0x3c] sm:$0xff]
          %v378 = vld [vmem:[#allocation6 + $0x44] sm:$0xf]
          %v379 = vld [vmem:[#allocation6 + $0x48] sm:$0xff]
          %v380 = vld [vmem:[#allocation6 + $0x50] sm:$0xf]
          %v381 = vld [vmem:[#allocation6 + $0x54] sm:$0xff]
          %v382 = vld [vmem:[#allocation6 + $0x5c] sm:$0xf]
          %v383 = vld [vmem:[#allocation6 + $0x60] sm:$0xff]
          %v384 = vld [vmem:[#allocation6 + $0x68] sm:$0xf]
          %v385 = vld [vmem:[#allocation6 + $0x6c] sm:$0xff]
          %v386 = vld [vmem:[#allocation6 + $0x74] sm:$0xf]
          %v387 = vld [vmem:[#allocation6 + $0x78] sm:$0xff]
          %v388 = vld [vmem:[#allocation6 + $0x80] sm:$0xf]
          %v389 = vld [vmem:[#allocation6 + $0x84] sm:$0xff]
          %v390 = vld [vmem:[#allocation6 + $0x8c] sm:$0xf]
          %v391 = vld [vmem:[#allocation6 + $0x90] sm:$0xff]
          %v392 = vld [vmem:[#allocation6 + $0x98] sm:$0xf]
          %v393 = vld [vmem:[#allocation6 + $0x9c] sm:$0xff]
          %v394 = vld [vmem:[#allocation6 + $0xa4] sm:$0xf]
          %v395 = vld [vmem:[#allocation6 + $0xa8] sm:$0xff]
          %v396 = vld [vmem:[#allocation6 + $0xb0] sm:$0xf]
          %v397 = vld [vmem:[#allocation6 + $0xb4] sm:$0xff]
          %v398 = vld [vmem:[#allocation6 + $0xbc] sm:$0xf]
          %v399 = vld [vmem:[%s4] sm:$0x7]
          %v401 = vlaneseq
          %v402 = vshrl.u32 %v401, 7
          %v403 = vsub.s32 0, %v402
          %v404 = vrot.slane %v399, %v403
          %v405 = vlaneseq
          %v406 = vshrl.u32 %v405, 7
          %v407 = vsub.s32 1, %v406
          %v408 = vrot.slane %v399, %v407
          %v409 = vlaneseq
          %v410 = vshrl.u32 %v409, 7
          %v411 = vsub.s32 2, %v410
          %v412 = vrot.slane %v399, %v411
          %v432 = vunpack.c.l.b16 %v351
          %v433 = vunpack.c.l.b16 %v352
          %v434 = vunpack.c.l.b16 %v353
          %v435 = vunpack.c.l.b16 %v354
          %v436 = vunpack.c.l.b16 %v355
          %v437 = vunpack.c.l.b16 %v356
          %v438 = vunpack.c.l.b16 %v357
          %v439 = vunpack.c.l.b16 %v358
          %v440 = vunpack.c.l.b16 %v359
          %v441 = vunpack.c.l.b16 %v360
          %v442 = vunpack.c.l.b16 %v361
          %v443 = vunpack.c.l.b16 %v362
          %v444 = vunpack.c.l.b16 %v363
          %v445 = vunpack.c.l.b16 %v364
          %v446 = vunpack.c.l.b16 %v365
          %v447 = vunpack.c.l.b16 %v366
          %v448 = vpack.c.b16 %v433, %v432
          %v449 = vpack.c.b16 %v435, %v434
          %v450 = vpack.c.b16 %v437, %v436
          %v451 = vpack.c.b16 %v439, %v438
          %v452 = vpack.c.b16 %v441, %v440
          %v453 = vpack.c.b16 %v443, %v442
          %v454 = vpack.c.b16 %v445, %v444
          %v455 = vpack.c.b16 %v447, %v446
          %v496 = vunpack.c.l.b16 %v367
          %v497 = vunpack.c.h.b16 %v367
          %v498 = vunpack.c.l.b16 %v368
          %v499 = vunpack.c.l.b16 %v369
          %v500 = vunpack.c.h.b16 %v369
          %v501 = vunpack.c.l.b16 %v370
          %v502 = vunpack.c.l.b16 %v371
          %v503 = vunpack.c.h.b16 %v371
          %v504 = vunpack.c.l.b16 %v372
          %v505 = vunpack.c.l.b16 %v373
          %v506 = vunpack.c.h.b16 %v373
          %v507 = vunpack.c.l.b16 %v374
          %v508 = vunpack.c.l.b16 %v375
          %v509 = vunpack.c.h.b16 %v375
          %v510 = vunpack.c.l.b16 %v376
          %v511 = vunpack.c.l.b16 %v377
          %v512 = vunpack.c.h.b16 %v377
          %v513 = vunpack.c.l.b16 %v378
          %v514 = vunpack.c.l.b16 %v379
          %v515 = vunpack.c.h.b16 %v379
          %v516 = vunpack.c.l.b16 %v380
          %v517 = vunpack.c.l.b16 %v381
          %v518 = vunpack.c.h.b16 %v381
          %v519 = vunpack.c.l.b16 %v382
          %v520 = vunpack.c.l.b16 %v383
          %v521 = vunpack.c.h.b16 %v383
          %v522 = vunpack.c.l.b16 %v384
          %v523 = vunpack.c.l.b16 %v385
          %v524 = vunpack.c.h.b16 %v385
          %v525 = vunpack.c.l.b16 %v386
          %v526 = vunpack.c.l.b16 %v387
          %v527 = vunpack.c.h.b16 %v387
          %v528 = vunpack.c.l.b16 %v388
          %v529 = vunpack.c.l.b16 %v389
          %v530 = vunpack.c.h.b16 %v389
          %v531 = vunpack.c.l.b16 %v390
          %v532 = vunpack.c.l.b16 %v391
          %v533 = vunpack.c.h.b16 %v391
          %v534 = vunpack.c.l.b16 %v392
          %v535 = vunpack.c.l.b16 %v393
          %v536 = vunpack.c.h.b16 %v393
          %v537 = vunpack.c.l.b16 %v394
          %v538 = vunpack.c.l.b16 %v395
          %v539 = vunpack.c.h.b16 %v395
          %v540 = vunpack.c.l.b16 %v396
          %v541 = vunpack.c.l.b16 %v397
          %v542 = vunpack.c.h.b16 %v397
          %v543 = vunpack.c.l.b16 %v398
          %v544 = vpack.c.b16 %v499, %v496
          %v545 = vpack.c.b16 %v500, %v497
          %v546 = vpack.c.b16 %v501, %v498
          %v547 = vpack.c.b16 %v505, %v502
          %v548 = vpack.c.b16 %v506, %v503
          %v549 = vpack.c.b16 %v507, %v504
          %v550 = vpack.c.b16 %v511, %v508
          %v551 = vpack.c.b16 %v512, %v509
          %v552 = vpack.c.b16 %v513, %v510
          %v553 = vpack.c.b16 %v517, %v514
          %v554 = vpack.c.b16 %v518, %v515
          %v555 = vpack.c.b16 %v519, %v516
          %v556 = vpack.c.b16 %v523, %v520
          %v557 = vpack.c.b16 %v524, %v521
          %v558 = vpack.c.b16 %v525, %v522
          %v559 = vpack.c.b16 %v529, %v526
          %v560 = vpack.c.b16 %v530, %v527
          %v561 = vpack.c.b16 %v531, %v528
          %v562 = vpack.c.b16 %v535, %v532
          %v563 = vpack.c.b16 %v536, %v533
          %v564 = vpack.c.b16 %v537, %v534
          %v565 = vpack.c.b16 %v541, %v538
          %v566 = vpack.c.b16 %v542, %v539
          %v567 = vpack.c.b16 %v543, %v540
          %592 = vmatprep.subr.bf16.mxu0 %v545
          %593 = vmatpush1.bf16.msra.mxu0 %v544
          %594 = vmatprep.subr.bf16.mxu0 %v548
          %595 = vmatpush1.bf16.msra.mxu0 %v547
          %596 = vmatprep.subr.bf16.mxu0 %v551
          %597 = vmatpush1.bf16.msra.mxu0 %v550
          %598 = vmatprep.subr.bf16.mxu0 %v554
          %599 = vmatpush1.bf16.msra.mxu0 %v553
          %600 = vmatprep.subr.bf16.mxu0 %v557
          %601 = vmatpush1.bf16.msra.mxu0 %v556
          %602 = vmatprep.subr.bf16.mxu0 %v560
          %603 = vmatpush1.bf16.msra.mxu0 %v559
          %604 = vmatprep.subr.bf16.mxu0 %v563
          %605 = vmatpush1.bf16.msra.mxu0 %v562
          %606 = vmatprep.subr.bf16.mxu0 %v566
          %607 = vmatpush1.bf16.msra.mxu0 %v565
          %608 = vmatprep.subr.bf16.mxu0 0
          %609 = vmatpush1.bf16.msra.mxu0 0
          %610 = vmatprep.subr.bf16.mxu0 0
          %611 = vmatpush1.bf16.msra.mxu0 0
          %612 = vmatprep.subr.bf16.mxu0 0
          %613 = vmatpush1.bf16.msra.mxu0 0
          %614 = vmatprep.subr.bf16.mxu0 0
          %615 = vmatpush1.bf16.msra.mxu0 0
          %616 = vmatprep.subr.bf16.mxu0 0
          %617 = vmatpush1.bf16.msra.mxu0 0
          %618 = vmatprep.subr.bf16.mxu0 0
          %619 = vmatpush1.bf16.msra.mxu0 0
          %620 = vmatprep.subr.bf16.mxu0 0
          %621 = vmatpush1.bf16.msra.mxu0 0
          %622 = vmatprep.subr.bf16.mxu0 0
          %623 = vmatpush1.bf16.msra.mxu0 0
          %624 = vmatprep.mubr.bf16.mxu0 0
          %625 = vmatmul.mubr.bf16.gmra.mrb[0].mxu0 %v448
          %v626 = vpop.f32.mrb[0].mxu0
          %v627 = vadd.f32 %v404, %v626
          %v628 = vpop.f32.mrb[0].mxu0
          %v629 = vadd.f32 %v408, %v628
          %v630 = vpop.f32.mrb[0].mxu0
          %v631 = vadd.f32 %v404, %v630
          %v632 = vpop.f32.mrb[0].mxu0
          %v633 = vadd.f32 %v408, %v632
          %634 = vmatprep.mubr.bf16.mxu0 0
          %635 = vmatmul.mubr.bf16.gmra.mrb[0].mxu0 %v449
          %v636 = vpop.f32.mrb[0].mxu0
          %v637 = vadd.f32 %v404, %v636
          %v638 = vpop.f32.mrb[0].mxu0
          %v639 = vadd.f32 %v408, %v638
          %v640 = vpop.f32.mrb[0].mxu0
          %v641 = vadd.f32 %v404, %v640
          %v642 = vpop.f32.mrb[0].mxu0
          %v643 = vadd.f32 %v408, %v642
          %644 = vmatprep.mubr.bf16.mxu0 0
          %645 = vmatmul.mubr.bf16.gmra.mrb[0].mxu0 %v450
          %v646 = vpop.f32.mrb[0].mxu0
          %v647 = vadd.f32 %v404, %v646
          %v648 = vpop.f32.mrb[0].mxu0
          %v649 = vadd.f32 %v408, %v648
          %v650 = vpop.f32.mrb[0].mxu0
          %v651 = vadd.f32 %v404, %v650
          %v652 = vpop.f32.mrb[0].mxu0
          %v653 = vadd.f32 %v408, %v652
          %654 = vmatprep.mubr.bf16.mxu0 0
          %655 = vmatmul.mubr.bf16.gmra.mrb[0].mxu0 %v451
          %v656 = vpop.f32.mrb[0].mxu0
          %v657 = vadd.f32 %v404, %v656
          %v658 = vpop.f32.mrb[0].mxu0
          %v659 = vadd.f32 %v408, %v658
          %v660 = vpop.f32.mrb[0].mxu0
          %v661 = vadd.f32 %v404, %v660
          %v662 = vpop.f32.mrb[0].mxu0
          %v663 = vadd.f32 %v408, %v662
          %664 = vmatprep.mubr.bf16.mxu0 0
          %665 = vmatmul.mubr.bf16.gmra.mrb[0].mxu0 %v452
          %v666 = vpop.f32.mrb[0].mxu0
          %v667 = vadd.f32 %v404, %v666
          %v668 = vpop.f32.mrb[0].mxu0
          %v669 = vadd.f32 %v408, %v668
          %v670 = vpop.f32.mrb[0].mxu0
          %v671 = vadd.f32 %v404, %v670
          %v672 = vpop.f32.mrb[0].mxu0
          %v673 = vadd.f32 %v408, %v672
          %674 = vmatprep.mubr.bf16.mxu0 0
          %675 = vmatmul.mubr.bf16.gmra.mrb[0].mxu0 %v453
          %v676 = vpop.f32.mrb[0].mxu0
          %v677 = vadd.f32 %v404, %v676
          %v678 = vpop.f32.mrb[0].mxu0
          %v679 = vadd.f32 %v408, %v678
          %v680 = vpop.f32.mrb[0].mxu0
          %v681 = vadd.f32 %v404, %v680
          %v682 = vpop.f32.mrb[0].mxu0
          %v683 = vadd.f32 %v408, %v682
          %684 = vmatprep.mubr.bf16.mxu0 0
          %685 = vmatmul.mubr.bf16.gmra.mrb[0].mxu0 %v454
          %v686 = vpop.f32.mrb[0].mxu0
          %v687 = vadd.f32 %v404, %v686
          %v688 = vpop.f32.mrb[0].mxu0
          %v689 = vadd.f32 %v408, %v688
          %v690 = vpop.f32.mrb[0].mxu0
          %v691 = vadd.f32 %v404, %v690
          %v692 = vpop.f32.mrb[0].mxu0
          %v693 = vadd.f32 %v408, %v692
          %694 = vmatprep.mubr.bf16.mxu0 0
          %695 = vmatmul.mubr.bf16.gmra.mrb[0].mxu0 %v455
          %v696 = vpop.f32.mrb[0].mxu0
          %v697 = vadd.f32 %v404, %v696
          %v698 = vpop.f32.mrb[0].mxu0
          %v699 = vadd.f32 %v408, %v698
          %v700 = vpop.f32.mrb[0].mxu0
          %v701 = vadd.f32 %v404, %v700
          %v702 = vpop.f32.mrb[0].mxu0
          %v703 = vadd.f32 %v408, %v702
          %704 = vdwg.mxu0
          %705 = vmatprep.subr.bf16.mxu0 0
          %706 = vmatpush1.bf16.msra.mxu0 %v546
          %707 = vmatprep.subr.bf16.mxu0 0
          %708 = vmatpush1.bf16.msra.mxu0 %v549
          %709 = vmatprep.subr.bf16.mxu0 0
          %710 = vmatpush1.bf16.msra.mxu0 %v552
          %711 = vmatprep.subr.bf16.mxu0 0
          %712 = vmatpush1.bf16.msra.mxu0 %v555
          %713 = vmatprep.subr.bf16.mxu0 0
          %714 = vmatpush1.bf16.msra.mxu0 %v558
          %715 = vmatprep.subr.bf16.mxu0 0
          %716 = vmatpush1.bf16.msra.mxu0 %v561
          %717 = vmatprep.subr.bf16.mxu0 0
          %718 = vmatpush1.bf16.msra.mxu0 %v564
          %719 = vmatprep.subr.bf16.mxu0 0
          %720 = vmatpush1.bf16.msra.mxu0 %v567
          %721 = vmatprep.subr.bf16.mxu0 0
          %722 = vmatpush1.bf16.msra.mxu0 0
          %723 = vmatprep.subr.bf16.mxu0 0
          %724 = vmatpush1.bf16.msra.mxu0 0
          %725 = vmatprep.subr.bf16.mxu0 0
          %726 = vmatpush1.bf16.msra.mxu0 0
          %727 = vmatprep.subr.bf16.mxu0 0
          %728 = vmatpush1.bf16.msra.mxu0 0
          %729 = vmatprep.subr.bf16.mxu0 0
          %730 = vmatpush1.bf16.msra.mxu0 0
          %731 = vmatprep.subr.bf16.mxu0 0
          %732 = vmatpush1.bf16.msra.mxu0 0
          %733 = vmatprep.subr.bf16.mxu0 0
          %734 = vmatpush1.bf16.msra.mxu0 0
          %735 = vmatprep.subr.bf16.mxu0 0
          %736 = vmatpush1.bf16.msra.mxu0 0
          %737 = vmatprep.mubr.bf16.mxu0 0
          %738 = vmatmul.mubr.bf16.gmra.mrb[0].mxu0 %v448
          %v739 = vpop.f32.mrb[0].mxu0
          %v740 = vadd.f32 %v412, %v739
          %v741 = vpop.f32.mrb[0].mxu0
          %v742 = vpop.f32.mrb[0].mxu0
          %v743 = vadd.f32 %v412, %v742
          %v744 = vpop.f32.mrb[0].mxu0
          %745 = vmatprep.mubr.bf16.mxu0 0
          %746 = vmatmul.mubr.bf16.gmra.mrb[0].mxu0 %v449
          %v747 = vpop.f32.mrb[0].mxu0
          %v748 = vadd.f32 %v412, %v747
          %v749 = vpop.f32.mrb[0].mxu0
          %v750 = vpop.f32.mrb[0].mxu0
          %v751 = vadd.f32 %v412, %v750
          %v752 = vpop.f32.mrb[0].mxu0
          %753 = vmatprep.mubr.bf16.mxu0 0
          %754 = vmatmul.mubr.bf16.gmra.mrb[0].mxu0 %v450
          %v755 = vpop.f32.mrb[0].mxu0
          %v756 = vadd.f32 %v412, %v755
          %v757 = vpop.f32.mrb[0].mxu0
          %v758 = vpop.f32.mrb[0].mxu0
          %v759 = vadd.f32 %v412, %v758
          %v760 = vpop.f32.mrb[0].mxu0
          %761 = vmatprep.mubr.bf16.mxu0 0
          %762 = vmatmul.mubr.bf16.gmra.mrb[0].mxu0 %v451
          %v763 = vpop.f32.mrb[0].mxu0
          %v764 = vadd.f32 %v412, %v763
          %v765 = vpop.f32.mrb[0].mxu0
          %v766 = vpop.f32.mrb[0].mxu0
          %v767 = vadd.f32 %v412, %v766
          %v768 = vpop.f32.mrb[0].mxu0
          %769 = vmatprep.mubr.bf16.mxu0 0
          %770 = vmatmul.mubr.bf16.gmra.mrb[0].mxu0 %v452
          %v771 = vpop.f32.mrb[0].mxu0
          %v772 = vadd.f32 %v412, %v771
          %v773 = vpop.f32.mrb[0].mxu0
          %v774 = vpop.f32.mrb[0].mxu0
          %v775 = vadd.f32 %v412, %v774
          %v776 = vpop.f32.mrb[0].mxu0
          %777 = vmatprep.mubr.bf16.mxu0 0
          %778 = vmatmul.mubr.bf16.gmra.mrb[0].mxu0 %v453
          %v779 = vpop.f32.mrb[0].mxu0
          %v780 = vadd.f32 %v412, %v779
          %v781 = vpop.f32.mrb[0].mxu0
          %v782 = vpop.f32.mrb[0].mxu0
          %v783 = vadd.f32 %v412, %v782
          %v784 = vpop.f32.mrb[0].mxu0
          %785 = vmatprep.mubr.bf16.mxu0 0
          %786 = vmatmul.mubr.bf16.gmra.mrb[0].mxu0 %v454
          %v787 = vpop.f32.mrb[0].mxu0
          %v788 = vadd.f32 %v412, %v787
          %v789 = vpop.f32.mrb[0].mxu0
          %v790 = vpop.f32.mrb[0].mxu0
          %v791 = vadd.f32 %v412, %v790
          %v792 = vpop.f32.mrb[0].mxu0
          %793 = vmatprep.mubr.bf16.mxu0 0
          %794 = vmatmul.mubr.bf16.gmra.mrb[0].mxu0 %v455
          %v795 = vpop.f32.mrb[0].mxu0
          %v796 = vadd.f32 %v412, %v795
          %v797 = vpop.f32.mrb[0].mxu0
          %v798 = vpop.f32.mrb[0].mxu0
          %v799 = vadd.f32 %v412, %v798
          %v800 = vpop.f32.mrb[0].mxu0
          %801 = vdwg.mxu0
          %v802 = vpack.c.bf16 %v631, %v627
          %v803 = vpack.c.bf16 %v641, %v637
          %v804 = vpack.c.bf16 %v651, %v647
          %v805 = vpack.c.bf16 %v661, %v657
          %v806 = vpack.c.bf16 %v671, %v667
          %v807 = vpack.c.bf16 %v681, %v677
          %v808 = vpack.c.bf16 %v691, %v687
          %v809 = vpack.c.bf16 %v701, %v697
          %810 = vst [vmem:[#allocation2] sm:$0xff] %v802
          %811 = vst [vmem:[#allocation2 + $0x8] sm:$0xff] %v803
          %812 = vst [vmem:[#allocation2 + $0x10] sm:$0xff] %v804
          %813 = vst [vmem:[#allocation2 + $0x18] sm:$0xff] %v805
          %814 = vst [vmem:[#allocation2 + $0x20] sm:$0xff] %v806
          %815 = vst [vmem:[#allocation2 + $0x28] sm:$0xff] %v807
          %816 = vst [vmem:[#allocation2 + $0x30] sm:$0xff] %v808
          %817 = vst [vmem:[#allocation2 + $0x38] sm:$0xff] %v809
          %818 = vst [vmem:[#allocation3] sm:$0xff] %v629
          %819 = vst [vmem:[#allocation3 + $0x8] sm:$0xff] %v633
          %820 = vst [vmem:[#allocation3 + $0x10] sm:$0xff] %v639
          %821 = vst [vmem:[#allocation3 + $0x18] sm:$0xff] %v643
          %822 = vst [vmem:[#allocation3 + $0x20] sm:$0xff] %v649
          %823 = vst [vmem:[#allocation3 + $0x28] sm:$0xff] %v653
          %824 = vst [vmem:[#allocation3 + $0x30] sm:$0xff] %v659
          %825 = vst [vmem:[#allocation3 + $0x38] sm:$0xff] %v663
          %826 = vst [vmem:[#allocation3 + $0x40] sm:$0xff] %v669
          %827 = vst [vmem:[#allocation3 + $0x48] sm:$0xff] %v673
          %828 = vst [vmem:[#allocation3 + $0x50] sm:$0xff] %v679
          %829 = vst [vmem:[#allocation3 + $0x58] sm:$0xff] %v683
          %830 = vst [vmem:[#allocation3 + $0x60] sm:$0xff] %v689
          %831 = vst [vmem:[#allocation3 + $0x68] sm:$0xff] %v693
          %832 = vst [vmem:[#allocation3 + $0x70] sm:$0xff] %v699
          %833 = vst [vmem:[#allocation3 + $0x78] sm:$0xff] %v703
          %834 = vst [vmem:[#allocation4] sm:$0xff] %v740
          %835 = vst [vmem:[#allocation4 + $0x8] sm:$0xff] %v743
          %836 = vst [vmem:[#allocation4 + $0x10] sm:$0xff] %v748
          %837 = vst [vmem:[#allocation4 + $0x18] sm:$0xff] %v751
          %838 = vst [vmem:[#allocation4 + $0x20] sm:$0xff] %v756
          %839 = vst [vmem:[#allocation4 + $0x28] sm:$0xff] %v759
          %840 = vst [vmem:[#allocation4 + $0x30] sm:$0xff] %v764
          %841 = vst [vmem:[#allocation4 + $0x38] sm:$0xff] %v767
          %842 = vst [vmem:[#allocation4 + $0x40] sm:$0xff] %v772
          %843 = vst [vmem:[#allocation4 + $0x48] sm:$0xff] %v775
          %844 = vst [vmem:[#allocation4 + $0x50] sm:$0xff] %v780
          %845 = vst [vmem:[#allocation4 + $0x58] sm:$0xff] %v783
          %846 = vst [vmem:[#allocation4 + $0x60] sm:$0xff] %v788
          %847 = vst [vmem:[#allocation4 + $0x68] sm:$0xff] %v791
          %848 = vst [vmem:[#allocation4 + $0x70] sm:$0xff] %v796
          %849 = vst [vmem:[#allocation4 + $0x78] sm:$0xff] %v799
        $region60: #{tpu_custom_call.1} parent=47 // pred_fallthru
          _
        %p850 = scmp.eq.s32.totalorder %s27, 1
        %p851 = pnand %p850, %p346
        %p852 = pneg %p851
        // Predicated region
        $region61: #{tpu_custom_call.1} parent=47 // pred_check
          _
        $region62: #{tpu_custom_call.1} parent=47 // pred_check_branch
          %854 = sbr.rel (%p851) target = $region64
        $region63: #{tpu_custom_call.1} parent=47 // pred_region
          %v855 = vld [vmem:[#allocation5] sm:$0xff]
          %v856 = vld [vmem:[#allocation5 + $0x8] sm:$0xff]
          %v857 = vld [vmem:[#allocation5 + $0x10] sm:$0xff]
          %v858 = vld [vmem:[#allocation5 + $0x18] sm:$0xff]
          %v859 = vld [vmem:[#allocation5 + $0x20] sm:$0xff]
          %v860 = vld [vmem:[#allocation5 + $0x28] sm:$0xff]
          %v861 = vld [vmem:[#allocation5 + $0x30] sm:$0xff]
          %v862 = vld [vmem:[#allocation5 + $0x38] sm:$0xff]
          %v863 = vld [vmem:[#allocation9] sm:$0xff]
          %v864 = vld [vmem:[#allocation9 + $0x8] sm:$0xf]
          %v865 = vld [vmem:[#allocation9 + $0xc] sm:$0xff]
          %v866 = vld [vmem:[#allocation9 + $0x14] sm:$0xf]
          %v867 = vld [vmem:[#allocation9 + $0x18] sm:$0xff]
          %v868 = vld [vmem:[#allocation9 + $0x20] sm:$0xf]
          %v869 = vld [vmem:[#allocation9 + $0x24] sm:$0xff]
          %v870 = vld [vmem:[#allocation9 + $0x2c] sm:$0xf]
          %v871 = vld [vmem:[#allocation9 + $0x30] sm:$0xff]
          %v872 = vld [vmem:[#allocation9 + $0x38] sm:$0xf]
          %v873 = vld [vmem:[#allocation9 + $0x3c] sm:$0xff]
          %v874 = vld [vmem:[#allocation9 + $0x44] sm:$0xf]
          %v875 = vld [vmem:[#allocation9 + $0x48] sm:$0xff]
          %v876 = vld [vmem:[#allocation9 + $0x50] sm:$0xf]
          %v877 = vld [vmem:[#allocation9 + $0x54] sm:$0xff]
          %v878 = vld [vmem:[#allocation9 + $0x5c] sm:$0xf]
          %v879 = vld [vmem:[#allocation9 + $0x60] sm:$0xff]
          %v880 = vld [vmem:[#allocation9 + $0x68] sm:$0xf]
          %v881 = vld [vmem:[#allocation9 + $0x6c] sm:$0xff]
          %v882 = vld [vmem:[#allocation9 + $0x74] sm:$0xf]
          %v883 = vld [vmem:[#allocation9 + $0x78] sm:$0xff]
          %v884 = vld [vmem:[#allocation9 + $0x80] sm:$0xf]
          %v885 = vld [vmem:[#allocation9 + $0x84] sm:$0xff]
          %v886 = vld [vmem:[#allocation9 + $0x8c] sm:$0xf]
          %v887 = vld [vmem:[#allocation9 + $0x90] sm:$0xff]
          %v888 = vld [vmem:[#allocation9 + $0x98] sm:$0xf]
          %v889 = vld [vmem:[#allocation9 + $0x9c] sm:$0xff]
          %v890 = vld [vmem:[#allocation9 + $0xa4] sm:$0xf]
          %v891 = vld [vmem:[#allocation9 + $0xa8] sm:$0xff]
          %v892 = vld [vmem:[#allocation9 + $0xb0] sm:$0xf]
          %v893 = vld [vmem:[#allocation9 + $0xb4] sm:$0xff]
          %v894 = vld [vmem:[#allocation9 + $0xbc] sm:$0xf]
          %v895 = vld [vmem:[%s6] sm:$0x7]
          %v897 = vlaneseq
          %v898 = vshrl.u32 %v897, 7
          %v899 = vsub.s32 0, %v898
          %v900 = vrot.slane %v895, %v899
          %v901 = vlaneseq
          %v902 = vshrl.u32 %v901, 7
          %v903 = vsub.s32 1, %v902
          %v904 = vrot.slane %v895, %v903
          %v905 = vlaneseq
          %v906 = vshrl.u32 %v905, 7
          %v907 = vsub.s32 2, %v906
          %v908 = vrot.slane %v895, %v907
          %v944 = vunpack.c.l.b16 %v863
          %v945 = vunpack.c.h.b16 %v863
          %v946 = vunpack.c.l.b16 %v864
          %v947 = vunpack.c.l.b16 %v865
          %v948 = vunpack.c.h.b16 %v865
          %v949 = vunpack.c.l.b16 %v866
          %v950 = vunpack.c.l.b16 %v867
          %v951 = vunpack.c.h.b16 %v867
          %v952 = vunpack.c.l.b16 %v868
          %v953 = vunpack.c.l.b16 %v869
          %v954 = vunpack.c.h.b16 %v869
          %v955 = vunpack.c.l.b16 %v870
          %v956 = vunpack.c.l.b16 %v871
          %v957 = vunpack.c.h.b16 %v871
          %v958 = vunpack.c.l.b16 %v872
          %v959 = vunpack.c.l.b16 %v873
          %v960 = vunpack.c.h.b16 %v873
          %v961 = vunpack.c.l.b16 %v874
          %v962 = vunpack.c.l.b16 %v875
          %v963 = vunpack.c.h.b16 %v875
          %v964 = vunpack.c.l.b16 %v876
          %v965 = vunpack.c.l.b16 %v877
          %v966 = vunpack.c.h.b16 %v877
          %v967 = vunpack.c.l.b16 %v878
          %v968 = vunpack.c.l.b16 %v879
          %v969 = vunpack.c.h.b16 %v879
          %v970 = vunpack.c.l.b16 %v880
          %v971 = vunpack.c.l.b16 %v881
          %v972 = vunpack.c.h.b16 %v881
          %v973 = vunpack.c.l.b16 %v882
          %v974 = vunpack.c.l.b16 %v883
          %v975 = vunpack.c.h.b16 %v883
          %v976 = vunpack.c.l.b16 %v884
          %v977 = vunpack.c.l.b16 %v885
          %v978 = vunpack.c.h.b16 %v885
          %v979 = vunpack.c.l.b16 %v886
          %v980 = vunpack.c.l.b16 %v887
          %v981 = vunpack.c.h.b16 %v887
          %v982 = vunpack.c.l.b16 %v888
          %v983 = vunpack.c.l.b16 %v889
          %v984 = vunpack.c.h.b16 %v889
          %v985 = vunpack.c.l.b16 %v890
          %v986 = vunpack.c.l.b16 %v891
          %v987 = vunpack.c.h.b16 %v891
          %v988 = vunpack.c.l.b16 %v892
          %v989 = vunpack.c.l.b16 %v893
          %v990 = vunpack.c.h.b16 %v893
          %v991 = vunpack.c.l.b16 %v894
          %v992 = vpack.c.b16 %v947, %v944
          %v993 = vpack.c.b16 %v948, %v945
          %v994 = vpack.c.b16 %v949, %v946
          %v995 = vpack.c.b16 %v953, %v950
          %v996 = vpack.c.b16 %v954, %v951
          %v997 = vpack.c.b16 %v955, %v952
          %v998 = vpack.c.b16 %v959, %v956
          %v999 = vpack.c.b16 %v960, %v957
          %v1000 = vpack.c.b16 %v961, %v958
          %v1001 = vpack.c.b16 %v965, %v962
          %v1002 = vpack.c.b16 %v966, %v963
          %v1003 = vpack.c.b16 %v967, %v964
          %v1004 = vpack.c.b16 %v971, %v968
          %v1005 = vpack.c.b16 %v972, %v969
          %v1006 = vpack.c.b16 %v973, %v970
          %v1007 = vpack.c.b16 %v977, %v974
          %v1008 = vpack.c.b16 %v978, %v975
          %v1009 = vpack.c.b16 %v979, %v976
          %v1010 = vpack.c.b16 %v983, %v980
          %v1011 = vpack.c.b16 %v984, %v981
          %v1012 = vpack.c.b16 %v985, %v982
          %v1013 = vpack.c.b16 %v989, %v986
          %v1014 = vpack.c.b16 %v990, %v987
          %v1015 = vpack.c.b16 %v991, %v988
          %1040 = vmatprep.subr.bf16.mxu0 %v993
          %1041 = vmatpush1.bf16.msra.mxu0 %v992
          %1042 = vmatprep.subr.bf16.mxu0 %v996
          %1043 = vmatpush1.bf16.msra.mxu0 %v995
          %1044 = vmatprep.subr.bf16.mxu0 %v999
          %1045 = vmatpush1.bf16.msra.mxu0 %v998
          %1046 = vmatprep.subr.bf16.mxu0 %v1002
          %1047 = vmatpush1.bf16.msra.mxu0 %v1001
          %1048 = vmatprep.subr.bf16.mxu0 %v1005
          %1049 = vmatpush1.bf16.msra.mxu0 %v1004
          %1050 = vmatprep.subr.bf16.mxu0 %v1008
          %1051 = vmatpush1.bf16.msra.mxu0 %v1007
          %1052 = vmatprep.subr.bf16.mxu0 %v1011
          %1053 = vmatpush1.bf16.msra.mxu0 %v1010
          %1054 = vmatprep.subr.bf16.mxu0 %v1014
          %1055 = vmatpush1.bf16.msra.mxu0 %v1013
          %1056 = vmatprep.subr.bf16.mxu0 0
          %1057 = vmatpush1.bf16.msra.mxu0 0
          %1058 = vmatprep.subr.bf16.mxu0 0
          %1059 = vmatpush1.bf16.msra.mxu0 0
          %1060 = vmatprep.subr.bf16.mxu0 0
          %1061 = vmatpush1.bf16.msra.mxu0 0
          %1062 = vmatprep.subr.bf16.mxu0 0
          %1063 = vmatpush1.bf16.msra.mxu0 0
          %1064 = vmatprep.subr.bf16.mxu0 0
          %1065 = vmatpush1.bf16.msra.mxu0 0
          %1066 = vmatprep.subr.bf16.mxu0 0
          %1067 = vmatpush1.bf16.msra.mxu0 0
          %1068 = vmatprep.subr.bf16.mxu0 0
          %1069 = vmatpush1.bf16.msra.mxu0 0
          %1070 = vmatprep.subr.bf16.mxu0 0
          %1071 = vmatpush1.bf16.msra.mxu0 0
          %1072 = vmatprep.mubr.bf16.mxu0 0
          %1073 = vmatmul.mubr.bf16.gmra.mrb[0].mxu0 %v855
          %v1074 = vpop.f32.mrb[0].mxu0
          %v1075 = vadd.f32 %v900, %v1074
          %v1076 = vpop.f32.mrb[0].mxu0
          %v1077 = vadd.f32 %v904, %v1076
          %v1078 = vpop.f32.mrb[0].mxu0
          %v1079 = vadd.f32 %v900, %v1078
          %v1080 = vpop.f32.mrb[0].mxu0
          %v1081 = vadd.f32 %v904, %v1080
          %1082 = vmatprep.mubr.bf16.mxu0 0
          %1083 = vmatmul.mubr.bf16.gmra.mrb[0].mxu0 %v856
          %v1084 = vpop.f32.mrb[0].mxu0
          %v1085 = vadd.f32 %v900, %v1084
          %v1086 = vpop.f32.mrb[0].mxu0
          %v1087 = vadd.f32 %v904, %v1086
          %v1088 = vpop.f32.mrb[0].mxu0
          %v1089 = vadd.f32 %v900, %v1088
          %v1090 = vpop.f32.mrb[0].mxu0
          %v1091 = vadd.f32 %v904, %v1090
          %1092 = vmatprep.mubr.bf16.mxu0 0
          %1093 = vmatmul.mubr.bf16.gmra.mrb[0].mxu0 %v857
          %v1094 = vpop.f32.mrb[0].mxu0
          %v1095 = vadd.f32 %v900, %v1094
          %v1096 = vpop.f32.mrb[0].mxu0
          %v1097 = vadd.f32 %v904, %v1096
          %v1098 = vpop.f32.mrb[0].mxu0
          %v1099 = vadd.f32 %v900, %v1098
          %v1100 = vpop.f32.mrb[0].mxu0
          %v1101 = vadd.f32 %v904, %v1100
          %1102 = vmatprep.mubr.bf16.mxu0 0
          %1103 = vmatmul.mubr.bf16.gmra.mrb[0].mxu0 %v858
          %v1104 = vpop.f32.mrb[0].mxu0
          %v1105 = vadd.f32 %v900, %v1104
          %v1106 = vpop.f32.mrb[0].mxu0
          %v1107 = vadd.f32 %v904, %v1106
          %v1108 = vpop.f32.mrb[0].mxu0
          %v1109 = vadd.f32 %v900, %v1108
          %v1110 = vpop.f32.mrb[0].mxu0
          %v1111 = vadd.f32 %v904, %v1110
          %1112 = vmatprep.mubr.bf16.mxu0 0
          %1113 = vmatmul.mubr.bf16.gmra.mrb[0].mxu0 %v859
          %v1114 = vpop.f32.mrb[0].mxu0
          %v1115 = vadd.f32 %v900, %v1114
          %v1116 = vpop.f32.mrb[0].mxu0
          %v1117 = vadd.f32 %v904, %v1116
          %v1118 = vpop.f32.mrb[0].mxu0
          %v1119 = vadd.f32 %v900, %v1118
          %v1120 = vpop.f32.mrb[0].mxu0
          %v1121 = vadd.f32 %v904, %v1120
          %1122 = vmatprep.mubr.bf16.mxu0 0
          %1123 = vmatmul.mubr.bf16.gmra.mrb[0].mxu0 %v860
          %v1124 = vpop.f32.mrb[0].mxu0
          %v1125 = vadd.f32 %v900, %v1124
          %v1126 = vpop.f32.mrb[0].mxu0
          %v1127 = vadd.f32 %v904, %v1126
          %v1128 = vpop.f32.mrb[0].mxu0
          %v1129 = vadd.f32 %v900, %v1128
          %v1130 = vpop.f32.mrb[0].mxu0
          %v1131 = vadd.f32 %v904, %v1130
          %1132 = vmatprep.mubr.bf16.mxu0 0
          %1133 = vmatmul.mubr.bf16.gmra.mrb[0].mxu0 %v861
          %v1134 = vpop.f32.mrb[0].mxu0
          %v1135 = vadd.f32 %v900, %v1134
          %v1136 = vpop.f32.mrb[0].mxu0
          %v1137 = vadd.f32 %v904, %v1136
          %v1138 = vpop.f32.mrb[0].mxu0
          %v1139 = vadd.f32 %v900, %v1138
          %v1140 = vpop.f32.mrb[0].mxu0
          %v1141 = vadd.f32 %v904, %v1140
          %1142 = vmatprep.mubr.bf16.mxu0 0
          %1143 = vmatmul.mubr.bf16.gmra.mrb[0].mxu0 %v862
          %v1144 = vpop.f32.mrb[0].mxu0
          %v1145 = vadd.f32 %v900, %v1144
          %v1146 = vpop.f32.mrb[0].mxu0
          %v1147 = vadd.f32 %v904, %v1146
          %v1148 = vpop.f32.mrb[0].mxu0
          %v1149 = vadd.f32 %v900, %v1148
          %v1150 = vpop.f32.mrb[0].mxu0
          %v1151 = vadd.f32 %v904, %v1150
          %1152 = vdwg.mxu0
          %1153 = vmatprep.subr.bf16.mxu0 0
          %1154 = vmatpush1.bf16.msra.mxu0 %v994
          %1155 = vmatprep.subr.bf16.mxu0 0
          %1156 = vmatpush1.bf16.msra.mxu0 %v997
          %1157 = vmatprep.subr.bf16.mxu0 0
          %1158 = vmatpush1.bf16.msra.mxu0 %v1000
          %1159 = vmatprep.subr.bf16.mxu0 0
          %1160 = vmatpush1.bf16.msra.mxu0 %v1003
          %1161 = vmatprep.subr.bf16.mxu0 0
          %1162 = vmatpush1.bf16.msra.mxu0 %v1006
          %1163 = vmatprep.subr.bf16.mxu0 0
          %1164 = vmatpush1.bf16.msra.mxu0 %v1009
          %1165 = vmatprep.subr.bf16.mxu0 0
          %1166 = vmatpush1.bf16.msra.mxu0 %v1012
          %1167 = vmatprep.subr.bf16.mxu0 0
          %1168 = vmatpush1.bf16.msra.mxu0 %v1015
          %1169 = vmatprep.subr.bf16.mxu0 0
          %1170 = vmatpush1.bf16.msra.mxu0 0
          %1171 = vmatprep.subr.bf16.mxu0 0
          %1172 = vmatpush1.bf16.msra.mxu0 0
          %1173 = vmatprep.subr.bf16.mxu0 0
          %1174 = vmatpush1.bf16.msra.mxu0 0
          %1175 = vmatprep.subr.bf16.mxu0 0
          %1176 = vmatpush1.bf16.msra.mxu0 0
          %1177 = vmatprep.subr.bf16.mxu0 0
          %1178 = vmatpush1.bf16.msra.mxu0 0
          %1179 = vmatprep.subr.bf16.mxu0 0
          %1180 = vmatpush1.bf16.msra.mxu0 0
          %1181 = vmatprep.subr.bf16.mxu0 0
          %1182 = vmatpush1.bf16.msra.mxu0 0
          %1183 = vmatprep.subr.bf16.mxu0 0
          %1184 = vmatpush1.bf16.msra.mxu0 0
          %1185 = vmatprep.mubr.bf16.mxu0 0
          %1186 = vmatmul.mubr.bf16.gmra.mrb[0].mxu0 %v855
          %v1187 = vpop.f32.mrb[0].mxu0
          %v1188 = vadd.f32 %v908, %v1187
          %v1189 = vpop.f32.mrb[0].mxu0
          %v1190 = vpop.f32.mrb[0].mxu0
          %v1191 = vadd.f32 %v908, %v1190
          %v1192 = vpop.f32.mrb[0].mxu0
          %1193 = vmatprep.mubr.bf16.mxu0 0
          %1194 = vmatmul.mubr.bf16.gmra.mrb[0].mxu0 %v856
          %v1195 = vpop.f32.mrb[0].mxu0
          %v1196 = vadd.f32 %v908, %v1195
          %v1197 = vpop.f32.mrb[0].mxu0
          %v1198 = vpop.f32.mrb[0].mxu0
          %v1199 = vadd.f32 %v908, %v1198
          %v1200 = vpop.f32.mrb[0].mxu0
          %1201 = vmatprep.mubr.bf16.mxu0 0
          %1202 = vmatmul.mubr.bf16.gmra.mrb[0].mxu0 %v857
          %v1203 = vpop.f32.mrb[0].mxu0
          %v1204 = vadd.f32 %v908, %v1203
          %v1205 = vpop.f32.mrb[0].mxu0
          %v1206 = vpop.f32.mrb[0].mxu0
          %v1207 = vadd.f32 %v908, %v1206
          %v1208 = vpop.f32.mrb[0].mxu0
          %1209 = vmatprep.mubr.bf16.mxu0 0
          %1210 = vmatmul.mubr.bf16.gmra.mrb[0].mxu0 %v858
          %v1211 = vpop.f32.mrb[0].mxu0
          %v1212 = vadd.f32 %v908, %v1211
          %v1213 = vpop.f32.mrb[0].mxu0
          %v1214 = vpop.f32.mrb[0].mxu0
          %v1215 = vadd.f32 %v908, %v1214
          %v1216 = vpop.f32.mrb[0].mxu0
          %1217 = vmatprep.mubr.bf16.mxu0 0
          %1218 = vmatmul.mubr.bf16.gmra.mrb[0].mxu0 %v859
          %v1219 = vpop.f32.mrb[0].mxu0
          %v1220 = vadd.f32 %v908, %v1219
          %v1221 = vpop.f32.mrb[0].mxu0
          %v1222 = vpop.f32.mrb[0].mxu0
          %v1223 = vadd.f32 %v908, %v1222
          %v1224 = vpop.f32.mrb[0].mxu0
          %1225 = vmatprep.mubr.bf16.mxu0 0
          %1226 = vmatmul.mubr.bf16.gmra.mrb[0].mxu0 %v860
          %v1227 = vpop.f32.mrb[0].mxu0
          %v1228 = vadd.f32 %v908, %v1227
          %v1229 = vpop.f32.mrb[0].mxu0
          %v1230 = vpop.f32.mrb[0].mxu0
          %v1231 = vadd.f32 %v908, %v1230
          %v1232 = vpop.f32.mrb[0].mxu0
          %1233 = vmatprep.mubr.bf16.mxu0 0
          %1234 = vmatmul.mubr.bf16.gmra.mrb[0].mxu0 %v861
          %v1235 = vpop.f32.mrb[0].mxu0
          %v1236 = vadd.f32 %v908, %v1235
          %v1237 = vpop.f32.mrb[0].mxu0
          %v1238 = vpop.f32.mrb[0].mxu0
          %v1239 = vadd.f32 %v908, %v1238
          %v1240 = vpop.f32.mrb[0].mxu0
          %1241 = vmatprep.mubr.bf16.mxu0 0
          %1242 = vmatmul.mubr.bf16.gmra.mrb[0].mxu0 %v862
          %v1243 = vpop.f32.mrb[0].mxu0
          %v1244 = vadd.f32 %v908, %v1243
          %v1245 = vpop.f32.mrb[0].mxu0
          %v1246 = vpop.f32.mrb[0].mxu0
          %v1247 = vadd.f32 %v908, %v1246
          %v1248 = vpop.f32.mrb[0].mxu0
          %1249 = vdwg.mxu0
          %v1250 = vpack.c.bf16 %v1079, %v1075
          %v1251 = vpack.c.bf16 %v1089, %v1085
          %v1252 = vpack.c.bf16 %v1099, %v1095
          %v1253 = vpack.c.bf16 %v1109, %v1105
          %v1254 = vpack.c.bf16 %v1119, %v1115
          %v1255 = vpack.c.bf16 %v1129, %v1125
          %v1256 = vpack.c.bf16 %v1139, %v1135
          %v1257 = vpack.c.bf16 %v1149, %v1145
          %1258 = vst [vmem:[#allocation2] sm:$0xff] %v1250
          %1259 = vst [vmem:[#allocation2 + $0x8] sm:$0xff] %v1251
          %1260 = vst [vmem:[#allocation2 + $0x10] sm:$0xff] %v1252
          %1261 = vst [vmem:[#allocation2 + $0x18] sm:$0xff] %v1253
          %1262 = vst [vmem:[#allocation2 + $0x20] sm:$0xff] %v1254
          %1263 = vst [vmem:[#allocation2 + $0x28] sm:$0xff] %v1255
          %1264 = vst [vmem:[#allocation2 + $0x30] sm:$0xff] %v1256
          %1265 = vst [vmem:[#allocation2 + $0x38] sm:$0xff] %v1257
          %1266 = vst [vmem:[#allocation3] sm:$0xff] %v1077
          %1267 = vst [vmem:[#allocation3 + $0x8] sm:$0xff] %v1081
          %1268 = vst [vmem:[#allocation3 + $0x10] sm:$0xff] %v1087
          %1269 = vst [vmem:[#allocation3 + $0x18] sm:$0xff] %v1091
          %1270 = vst [vmem:[#allocation3 + $0x20] sm:$0xff] %v1097
          %1271 = vst [vmem:[#allocation3 + $0x28] sm:$0xff] %v1101
          %1272 = vst [vmem:[#allocation3 + $0x30] sm:$0xff] %v1107
          %1273 = vst [vmem:[#allocation3 + $0x38] sm:$0xff] %v1111
          %1274 = vst [vmem:[#allocation3 + $0x40] sm:$0xff] %v1117
          %1275 = vst [vmem:[#allocation3 + $0x48] sm:$0xff] %v1121
          %1276 = vst [vmem:[#allocation3 + $0x50] sm:$0xff] %v1127
          %1277 = vst [vmem:[#allocation3 + $0x58] sm:$0xff] %v1131
          %1278 = vst [vmem:[#allocation3 + $0x60] sm:$0xff] %v1137
          %1279 = vst [vmem:[#allocation3 + $0x68] sm:$0xff] %v1141
          %1280 = vst [vmem:[#allocation3 + $0x70] sm:$0xff] %v1147
          %1281 = vst [vmem:[#allocation3 + $0x78] sm:$0xff] %v1151
          %1282 = vst [vmem:[#allocation4] sm:$0xff] %v1188
          %1283 = vst [vmem:[#allocation4 + $0x8] sm:$0xff] %v1191
          %1284 = vst [vmem:[#allocation4 + $0x10] sm:$0xff] %v1196
          %1285 = vst [vmem:[#allocation4 + $0x18] sm:$0xff] %v1199
          %1286 = vst [vmem:[#allocation4 + $0x20] sm:$0xff] %v1204
          %1287 = vst [vmem:[#allocation4 + $0x28] sm:$0xff] %v1207
          %1288 = vst [vmem:[#allocation4 + $0x30] sm:$0xff] %v1212
          %1289 = vst [vmem:[#allocation4 + $0x38] sm:$0xff] %v1215
          %1290 = vst [vmem:[#allocation4 + $0x40] sm:$0xff] %v1220
          %1291 = vst [vmem:[#allocation4 + $0x48] sm:$0xff] %v1223
          %1292 = vst [vmem:[#allocation4 + $0x50] sm:$0xff] %v1228
          %1293 = vst [vmem:[#allocation4 + $0x58] sm:$0xff] %v1231
          %1294 = vst [vmem:[#allocation4 + $0x60] sm:$0xff] %v1236
          %1295 = vst [vmem:[#allocation4 + $0x68] sm:$0xff] %v1239
          %1296 = vst [vmem:[#allocation4 + $0x70] sm:$0xff] %v1244
          %1297 = vst [vmem:[#allocation4 + $0x78] sm:$0xff] %v1247
        $region64: #{tpu_custom_call.1} parent=47 // pred_fallthru
          _
        %v1298 = vld [vmem:[%s335] sm:$0xf]
        %v1299 = vld [vmem:[%s335 + $0x4] sm:$0xf]
        %v1300 = vld [vmem:[%s335 + $0x8] sm:$0xf]
        %v1301 = vld [vmem:[%s335 + $0xc] sm:$0xf]
        %v1302 = vld [vmem:[%s335 + $0x10] sm:$0xf]
        %v1303 = vld [vmem:[%s335 + $0x14] sm:$0xf]
        %v1304 = vld [vmem:[%s335 + $0x18] sm:$0xf]
        %v1305 = vld [vmem:[%s335 + $0x1c] sm:$0xf]
        %v1306 = vld [vmem:[#allocation2] sm:$0xff]
        %v1307 = vld [vmem:[#allocation2 + $0x8] sm:$0xff]
        %v1308 = vld [vmem:[#allocation2 + $0x10] sm:$0xff]
        %v1309 = vld [vmem:[#allocation2 + $0x18] sm:$0xff]
        %v1310 = vld [vmem:[#allocation2 + $0x20] sm:$0xff]
        %v1311 = vld [vmem:[#allocation2 + $0x28] sm:$0xff]
        %v1312 = vld [vmem:[#allocation2 + $0x30] sm:$0xff]
        %v1313 = vld [vmem:[#allocation2 + $0x38] sm:$0xff]
        %v1322 = vunpack.c.l.b16 %v1298
        %v1323 = vunpack.c.l.b16 %v1299
        %v1324 = vunpack.c.l.b16 %v1300
        %v1325 = vunpack.c.l.b16 %v1301
        %v1326 = vunpack.c.l.b16 %v1302
        %v1327 = vunpack.c.l.b16 %v1303
        %v1328 = vunpack.c.l.b16 %v1304
        %v1329 = vunpack.c.l.b16 %v1305
        %v1330 = vpack.c.b16 %v1323, %v1322
        %v1331 = vpack.c.b16 %v1325, %v1324
        %v1332 = vpack.c.b16 %v1327, %v1326
        %v1333 = vpack.c.b16 %v1329, %v1328
        %1338 = vmatprep.subr.bf16.mxu0 0
        %1339 = vmatpush1.bf16.msra.mxu0 %v1306
        %1340 = vmatprep.subr.bf16.mxu0 0
        %1341 = vmatpush1.bf16.msra.mxu0 %v1307
        %1342 = vmatprep.subr.bf16.mxu0 0
        %1343 = vmatpush1.bf16.msra.mxu0 %v1308
        %1344 = vmatprep.subr.bf16.mxu0 0
        %1345 = vmatpush1.bf16.msra.mxu0 %v1309
        %1346 = vmatprep.subr.bf16.mxu0 0
        %1347 = vmatpush1.bf16.msra.mxu0 %v1310
        %1348 = vmatprep.subr.bf16.mxu0 0
        %1349 = vmatpush1.bf16.msra.mxu0 %v1311
        %1350 = vmatprep.subr.bf16.mxu0 0
        %1351 = vmatpush1.bf16.msra.mxu0 %v1312
        %1352 = vmatprep.subr.bf16.mxu0 0
        %1353 = vmatpush1.bf16.msra.mxu0 %v1313
        %1354 = vmatprep.subr.bf16.mxu0 0
        %1355 = vmatpush1.bf16.msra.mxu0 0
        %1356 = vmatprep.subr.bf16.mxu0 0
        %1357 = vmatpush1.bf16.msra.mxu0 0
        %1358 = vmatprep.subr.bf16.mxu0 0
        %1359 = vmatpush1.bf16.msra.mxu0 0
        %1360 = vmatprep.subr.bf16.mxu0 0
        %1361 = vmatpush1.bf16.msra.mxu0 0
        %1362 = vmatprep.subr.bf16.mxu0 0
        %1363 = vmatpush1.bf16.msra.mxu0 0
        %1364 = vmatprep.subr.bf16.mxu0 0
        %1365 = vmatpush1.bf16.msra.mxu0 0
        %1366 = vmatprep.subr.bf16.mxu0 0
        %1367 = vmatpush1.bf16.msra.mxu0 0
        %1368 = vmatprep.subr.bf16.mxu0 0
        %1369 = vmatpush1.bf16.msra.mxu0 0
        %1370 = vmatprep.mubr.bf16.mxu0 0
        %1371 = vmatmul.mubr.bf16.gmra.mrb[0].mxu0 %v1330
        %v1372 = vpop.f32.mrb[0].mxu0
        %v1373 = vadd.f32 0.0, %v1372
        %v1374 = vpop.f32.mrb[0].mxu0
        %v1375 = vpop.f32.mrb[0].mxu0
        %v1376 = vadd.f32 0.0, %v1375
        %v1377 = vpop.f32.mrb[0].mxu0
        %1378 = vmatprep.mubr.bf16.mxu0 0
        %1379 = vmatmul.mubr.bf16.gmra.mrb[0].mxu0 %v1331
        %v1380 = vpop.f32.mrb[0].mxu0
        %v1381 = vadd.f32 0.0, %v1380
        %v1382 = vpop.f32.mrb[0].mxu0
        %v1383 = vpop.f32.mrb[0].mxu0
        %v1384 = vadd.f32 0.0, %v1383
        %v1385 = vpop.f32.mrb[0].mxu0
        %1386 = vmatprep.mubr.bf16.mxu0 0
        %1387 = vmatmul.mubr.bf16.gmra.mrb[0].mxu0 %v1332
        %v1388 = vpop.f32.mrb[0].mxu0
        %v1389 = vadd.f32 0.0, %v1388
        %v1390 = vpop.f32.mrb[0].mxu0
        %v1391 = vpop.f32.mrb[0].mxu0
        %v1392 = vadd.f32 0.0, %v1391
        %v1393 = vpop.f32.mrb[0].mxu0
        %1394 = vmatprep.mubr.bf16.mxu0 0
        %1395 = vmatmul.mubr.bf16.gmra.mrb[0].mxu0 %v1333
        %v1396 = vpop.f32.mrb[0].mxu0
        %v1397 = vadd.f32 0.0, %v1396
        %v1398 = vpop.f32.mrb[0].mxu0
        %v1399 = vpop.f32.mrb[0].mxu0
        %v1400 = vadd.f32 0.0, %v1399
        %v1401 = vpop.f32.mrb[0].mxu0
        %1402 = vdwg.mxu0
        %s1403 = smul.u32 %s28, 64
        %v1404 = vld [vmem:[%s341] sm:$0xff]
        %v1405 = vld [vmem:[%s341 + $0x8] sm:$0xff]
        %v1406 = vld [vmem:[%s341 + $0x10] sm:$0xff]
        %v1407 = vld [vmem:[%s341 + $0x18] sm:$0xff]
        %v1408 = vld [vmem:[%s341 + $0x20] sm:$0xff]
        %v1409 = vld [vmem:[%s341 + $0x28] sm:$0xff]
        %v1410 = vld [vmem:[%s341 + $0x30] sm:$0xff]
        %v1411 = vld [vmem:[%s341 + $0x38] sm:$0xff]
        %s1412 = scalar_lea.vmem [#allocation3], %s1403
        %v1413 = vld [vmem:[%s1412] sm:$0xff]
        %v1414 = vld [vmem:[%s1412 + $0x8] sm:$0xff]
        %v1415 = vld [vmem:[%s1412 + $0x10] sm:$0xff]
        %v1416 = vld [vmem:[%s1412 + $0x18] sm:$0xff]
        %v1417 = vld [vmem:[%s1412 + $0x20] sm:$0xff]
        %v1418 = vld [vmem:[%s1412 + $0x28] sm:$0xff]
        %v1419 = vld [vmem:[%s1412 + $0x30] sm:$0xff]
        %v1420 = vld [vmem:[%s1412 + $0x38] sm:$0xff]
        %1422 = vset.pattern.permute.xlu0 0
        %1423 = vperm.xlu0 %1422, %v1404
        %v1424 = vpop.permute.xlu0 %1423
        %1427 = vset.pattern.permute.xlu0 0
        %1428 = vperm.xlu0 %1427, %v1405
        %v1429 = vpop.permute.xlu0 %1428
        %1432 = vset.pattern.permute.xlu0 0
        %1433 = vperm.xlu0 %1432, %v1406
        %v1434 = vpop.permute.xlu0 %1433
        %1437 = vset.pattern.permute.xlu0 0
        %1438 = vperm.xlu0 %1437, %v1407
        %v1439 = vpop.permute.xlu0 %1438
        %1442 = vset.pattern.permute.xlu0 0
        %1443 = vperm.xlu0 %1442, %v1408
        %v1444 = vpop.permute.xlu0 %1443
        %1447 = vset.pattern.permute.xlu0 0
        %1448 = vperm.xlu0 %1447, %v1409
        %v1449 = vpop.permute.xlu0 %1448
        %1452 = vset.pattern.permute.xlu0 0
        %1453 = vperm.xlu0 %1452, %v1410
        %v1454 = vpop.permute.xlu0 %1453
        %1457 = vset.pattern.permute.xlu0 0
        %1458 = vperm.xlu0 %1457, %v1411
        %v1459 = vpop.permute.xlu0 %1458
        %v1461 = vmul.f32 %v1424, %v1413
        %v1462 = vmul.f32 %v1429, %v1414
        %v1463 = vmul.f32 %v1434, %v1415
        %v1464 = vmul.f32 %v1439, %v1416
        %v1465 = vmul.f32 %v1444, %v1417
        %v1466 = vmul.f32 %v1449, %v1418
        %v1467 = vmul.f32 %v1454, %v1419
        %v1468 = vmul.f32 %v1459, %v1420
        %v1469 = vsub.f32 %v1373, %v1461
        %v1470 = vsub.f32 %v1376, %v1462
        %v1471 = vsub.f32 %v1381, %v1463
        %v1472 = vsub.f32 %v1384, %v1464
        %v1473 = vsub.f32 %v1389, %v1465
        %v1474 = vsub.f32 %v1392, %v1466
        %v1475 = vsub.f32 %v1397, %v1467
        %v1476 = vsub.f32 %v1400, %v1468
        %s1477 = scalar_lea.vmem [#allocation4], %s1403
        %v1478 = vld [vmem:[%s1477] sm:$0xff]
        %v1479 = vld [vmem:[%s1477 + $0x8] sm:$0xff]
        %v1480 = vld [vmem:[%s1477 + $0x10] sm:$0xff]
        %v1481 = vld [vmem:[%s1477 + $0x18] sm:$0xff]
        %v1482 = vld [vmem:[%s1477 + $0x20] sm:$0xff]
        %v1483 = vld [vmem:[%s1477 + $0x28] sm:$0xff]
        %v1484 = vld [vmem:[%s1477 + $0x30] sm:$0xff]
        %v1485 = vld [vmem:[%s1477 + $0x38] sm:$0xff]
        %v1486 = vadd.f32 %v1469, %v1478
        %v1487 = vadd.f32 %v1470, %v1479
        %v1488 = vadd.f32 %v1471, %v1480
        %v1489 = vadd.f32 %v1472, %v1481
        %v1490 = vadd.f32 %v1473, %v1482
        %v1491 = vadd.f32 %v1474, %v1483
        %v1492 = vadd.f32 %v1475, %v1484
        %v1493 = vadd.f32 %v1476, %v1485
        // Predicated region
        $region65: #{tpu_custom_call.1} parent=47 // pred_check
          %p1494 = pneg %p345
        $region66: #{tpu_custom_call.1} parent=47 // pred_check_branch
          %1496 = sbr.rel (%p1494) target = $region68
        $region67: #{tpu_custom_call.1} parent=47 // pred_region
          %v1497 = vmax.f32 %v1486, 0.0
          %v1498 = vmax.f32 %v1487, 0.0
          %v1499 = vmax.f32 %v1488, 0.0
          %v1500 = vmax.f32 %v1489, 0.0
          %v1501 = vmax.f32 %v1490, 0.0
          %v1502 = vmax.f32 %v1491, 0.0
          %v1503 = vmax.f32 %v1492, 0.0
          %v1504 = vmax.f32 %v1493, 0.0
          %v1505 = vpack.c.bf16 %v1498, %v1497
          %v1506 = vpack.c.bf16 %v1500, %v1499
          %v1507 = vpack.c.bf16 %v1502, %v1501
          %v1508 = vpack.c.bf16 %v1504, %v1503
          %s1509 = sshra.s32 %s1403, 4
          %s1510 = sand.u32 %s1403, 15
          %s1511 = smul.addr %s1509, 8
          %s1512 = scalar_lea.vmem [#allocation5], %s1511
          %1513 = vst [vmem:[%s1512] sm:$0xff] %v1505
          %1514 = vst [vmem:[%s1512 + $0x8] sm:$0xff] %v1506
          %1515 = vst [vmem:[%s1512 + $0x10] sm:$0xff] %v1507
          %1516 = vst [vmem:[%s1512 + $0x18] sm:$0xff] %v1508
          %1517 = vst [vmem:[%s330] sm:$0xff] 0.0
          %1518 = vst [vmem:[%s330 + $0x8] sm:$0xff] 0.0
          %1519 = vst [vmem:[%s330 + $0x10] sm:$0xff] 0.0
          %1520 = vst [vmem:[%s330 + $0x18] sm:$0xff] 0.0
          %1521 = vst [vmem:[%s330 + $0x20] sm:$0xff] 0.0
          %1522 = vst [vmem:[%s330 + $0x28] sm:$0xff] 0.0
          %1523 = vst [vmem:[%s330 + $0x30] sm:$0xff] 0.0
          %1524 = vst [vmem:[%s330 + $0x38] sm:$0xff] 0.0
        $region68: #{tpu_custom_call.1} parent=47 // pred_fallthru
          _
        // Predicated region
        $region69: #{tpu_custom_call.1} parent=47 // pred_check
          %p1525 = pneg %p850
        $region70: #{tpu_custom_call.1} parent=47 // pred_check_branch
          %1527 = sbr.rel (%p1525) target = $region72
        $region71: #{tpu_custom_call.1} parent=47 // pred_region
          %1528 = vst [vmem:[%s330] sm:$0xff] %v1486
          %1529 = vst [vmem:[%s330 + $0x8] sm:$0xff] %v1487
          %1530 = vst [vmem:[%s330 + $0x10] sm:$0xff] %v1488
          %1531 = vst [vmem:[%s330 + $0x18] sm:$0xff] %v1489
          %1532 = vst [vmem:[%s330 + $0x20] sm:$0xff] %v1490
          %1533 = vst [vmem:[%s330 + $0x28] sm:$0xff] %v1491
          %1534 = vst [vmem:[%s330 + $0x30] sm:$0xff] %v1492
          %1535 = vst [vmem:[%s330 + $0x38] sm:$0xff] %v1493
        $region72: #{tpu_custom_call.1} parent=47 // pred_fallthru
          _
        %s1536 = sand.u32 %s200, 1
        %s1537 = scalar_lea.sflag [#allocation8], %s1536
        %s1538 = sand.u32 %s200, 1
        %s1539 = smul.addr %s1538, 64
        %s1540 = scalar_lea.vmem [#allocation11], %s1539
        // Predicated region
        $region73: #{tpu_custom_call.1} parent=47 // pred_check
          %p1541 = pneg %p210
        $region74: #{tpu_custom_call.1} parent=47 // pred_check_branch
          %1543 = sbr.rel (%p1541) target = $region76
        $region75: #{tpu_custom_call.1} parent=47 // pred_region
          %s1544 = smul.u32 8, %s28
          %s1546 = ssub.s32 1024, 1024
          %1547 = vsyncadd %s1537, %s1546
          %s1548 = smul.addr %s1544, 128
          %s1549 = scalar_lea.hbm %s7, %s1548
          %s1550 = sshll.u32 %s1540, 4
          %s1551 = int_to_ptr.vmem [resolvable:$true] %s1550
          %1556 = dma.vmem_to_hbm [thread:$0]  %s1551, 1024, %s1549, %s1537, 128, 128, 8
        $region76: #{tpu_custom_call.1} parent=47 // pred_fallthru
          _
      $region48: #{tpu_custom_call.1} parent=5 // pred_fallthru
        _
      %p1557 = scmp.le.s32.totalorder 2, %s18
      // Predicated region
      $region77: #{tpu_custom_call.1} parent=5 // pred_check
        %p1558 = pneg %p1557
      $region78: #{tpu_custom_call.1} parent=5 // pred_check_branch
        %1560 = sbr.rel (%p1558) target = $region80
      $region79: #{tpu_custom_call.1} parent=5 // pred_region
        %s1561 = ssub.s32 %s18, 2
        // Predicated region
        $region81: #{tpu_custom_call.1} parent=79 // pred_check
          %p1562 = pneg %p216
        $region82: #{tpu_custom_call.1} parent=79 // pred_check_branch
          %1564 = sbr.rel (%p1562) target = $region84
        $region83: #{tpu_custom_call.1} parent=79 // pred_region
          %s1565 = sand.u32 %s201, 1
          %s1566 = scalar_lea.sflag [#allocation8], %s1565
          %s1567 = sand.u32 %s201, 1
          %s1568 = smul.addr %s1567, 64
          %s1569 = scalar_lea.vmem [#allocation11], %s1568
          %1570 = dma.done %s1566, 1024
        $region84: #{tpu_custom_call.1} parent=79 // pred_fallthru
          _
      $region80: #{tpu_custom_call.1} parent=5 // pred_fallthru
        _
    $region6: #{tpu_custom_call.1} parent=1 // loop_footer
      %s22 = sadd.s32 1, %s18
    $region7: #{tpu_custom_call.1} parent=1 // loop_footer_branch
      %17 = sbr.rel target = $region3
    $region8: #{tpu_custom_call.1} parent=1 // loop_exit
      _
    %1571 = vsyncpa [#allocation7], 1
    %s1572 = scalar_lea.sflag [#allocation7], 1
    %1573 = vsyncpa %s1572, 1
    %1574 = vsyncpa [#allocation10], 1
    %1575 = vsyncpa [#allocation8], 1
    %s1576 = scalar_lea.sflag [#allocation8], 1
    %1577 = vsyncpa %s1576, 1

</llo_original>
